<compile_context>
chip_gen: v5e
topology: v5e:2x2
jax: 0.10.0
libtpu: 0.0.40
codegen_flags: <defaults>
</compile_context>

<pallas_src>
import jax
import jax.numpy as jnp
from jax.experimental import pallas as pl


_CPAD = 128  # padded channel width (real out-channels = 64): lane-dense layout


# ---------------------------------------------------------------------------
# Fused Pallas kernel (built per static shape via closure)
# ---------------------------------------------------------------------------

def _make_fused_kernel(N, OH, OW, PH, PW, C):
    """Row layouts (channel-last, C = padded channel width):
         conv1 output y1 : (N*OH*OW, C), row = n*OH*OW + h*OW + w
         pooled/identity : (N*PH*PW, C), row = n*PH*PW + i*PW + j
    """
    M2 = N * PH * PW

    def kernel(p1_ref, w1_ref, b1_ref, w2_ref, b2_ref, w3_ref, o_ref):
        # ---- conv1: im2col matmul + bias (MXU) ------------------------------
        y1 = jnp.dot(p1_ref[...], w1_ref[...],
                     preferred_element_type=jnp.float32) + b1_ref[...]

        # ---- maxpool 3x3 / stride 2 / pad 1 ---------------------------------
        # Implicit -inf padding never wins a max, so boundary windows simply
        # drop the out-of-range taps.  Only static unit-stride slices,
        # elementwise max and sublane concatenates are used.
        groups = []
        for n in range(N):
            base = n * OH * OW
            for i in range(PH):
                hs = [h for h in range(2 * i - 1, 2 * i + 2) if 0 <= h < OH]
                blk = y1[base + hs[0] * OW: base + (hs[0] + 1) * OW, :]
                for h in hs[1:]:
                    blk = jnp.maximum(blk, y1[base + h * OW: base + (h + 1) * OW, :])
                cols = []
                for j in range(PW):
                    ws = [w for w in range(2 * j - 1, 2 * j + 2) if 0 <= w < OW]
                    c = blk[ws[0]: ws[0] + 1, :]
                    for w in ws[1:]:
                        c = jnp.maximum(c, blk[w: w + 1, :])
                    cols.append(c)
                groups.append(jnp.concatenate(cols, axis=0))     # (PW, C)
        pooled = jnp.concatenate(groups, axis=0)                 # (M2, C) identity

        # ---- row-index decode for the 3x3 shifted-matmul convs --------------
        row = jax.lax.broadcasted_iota(jnp.int32, (M2, C), 0)
        if (PH & (PH - 1)) == 0 and (PW & (PW - 1)) == 0:   # powers of two: bit ops
            j_idx = row & (PW - 1)
            i_idx = (row >> (PW.bit_length() - 1)) & (PH - 1)
        else:                                               # generic fallback
            j_idx = row % PW
            i_idx = (row // PW) % PH

        def conv3x3(x, w_ref, bias):
            """3x3 / stride 1 / pad 1 conv as 9 shifted, masked MXU matmuls."""
            acc = jnp.zeros((M2, C), jnp.float32)
            for di in (-1, 0, 1):
                for dj in (-1, 0, 1):
                    t = (di + 1) * 3 + (dj + 1)
                    s = di * PW + dj                       # flat row shift for tap
                    if s == 0:
                        shifted = x
                    elif s > 0:
                        shifted = jnp.concatenate(
                            [x[s:, :], jnp.zeros((s, C), jnp.float32)], axis=0)
                    else:
                        shifted = jnp.concatenate(
                            [jnp.zeros((-s, C), jnp.float32), x[:s, :]], axis=0)
                    conds = []
                    if di < 0:
                        conds.append(i_idx >= -di)
                    if di > 0:
                        conds.append(i_idx < PH - di)
                    if dj < 0:
                        conds.append(j_idx >= -dj)
                    if dj > 0:
                        conds.append(j_idx < PW - dj)
                    if conds:
                        valid = conds[0]
                        for cnd in conds[1:]:
                            valid = valid & cnd
                        patch = jnp.where(valid, shifted, jnp.float32(0.0))
                    else:
                        patch = shifted
                    acc = acc + jnp.dot(patch, w_ref[t],
                                        preferred_element_type=jnp.float32)
            if bias is not None:
                acc = acc + bias
            return acc

        z = conv3x3(pooled, w2_ref, b2_ref[...])   # conv2 (bias=True)
        y3 = conv3x3(z, w3_ref, None)              # conv3 (bias=False)
        o_ref[...] = y3 + pooled                   # x += identity

    return kernel


# ---------------------------------------------------------------------------
# Glue: im2col for conv1, weight repacking (pure layout plumbing)
# ---------------------------------------------------------------------------

def _im2col(x_nhwc, kh, kw, stride, pad):
    """Extract conv patches. Returns (N*OH*OW, kh*kw*C) and (OH, OW)."""
    N, H, W, C = x_nhwc.shape
    xp = jnp.pad(x_nhwc, ((0, 0), (pad, pad), (pad, pad), (0, 0)))
    OH = (H + 2 * pad - kh) // stride + 1
    OW = (W + 2 * pad - kw) // stride + 1
    pieces = []
    for i in range(kh):
        for j in range(kw):
            pieces.append(xp[:, i:i + stride * OH:stride,
                             j:j + stride * OW:stride, :])      # (N, OH, OW, C)
    p = jnp.stack(pieces, axis=3)                               # (N, OH, OW, kh*kw, C)
    return p.reshape(N * OH * OW, kh * kw * C), (OH, OW)


def _repack_3x3(w, C):
    """PyTorch (OC, IC, 3, 3) -> (9, C, C): per-tap (IC, OC), zero-padded."""
    oc, ic, kh, kw = w.shape
    taps = jnp.transpose(w, (2, 3, 1, 0)).reshape(kh * kw, ic, oc)
    return jnp.zeros((kh * kw, C, C), jnp.float32).at[:, :ic, :oc].set(taps)


@jax.jit
def test_model0_forward(x_nchw, w1, b1, w2, b2, w3):
    """x: (N,3,H,W) NCHW -> (N,64,H//4,W//4) NCHW, matching the PyTorch module."""
    N = x_nchw.shape[0]
    oc = w1.shape[0]
    C = _CPAD

    x = jnp.transpose(x_nchw, (0, 2, 3, 1)).astype(jnp.float32)   # NHWC
    p1, (oh, ow) = _im2col(x, 7, 7, 2, 3)                         # (N*oh*ow, 147)
    K = p1.shape[1]
    Kp = ((K + 127) // 128) * 128                                 # 147 -> 256
    p1 = jnp.pad(p1, ((0, 0), (0, Kp - K)))

    w1p = jnp.zeros((Kp, C), jnp.float32).at[:K, :oc].set(
        jnp.transpose(w1, (2, 3, 1, 0)).reshape(K, oc))
    b1p = jnp.zeros((1, C), jnp.float32).at[0, :oc].set(b1)
    w2p = _repack_3x3(w2, C)
    b2p = jnp.zeros((1, C), jnp.float32).at[0, :oc].set(b2)
    w3p = _repack_3x3(w3, C)

    ph = (oh + 2 - 3) // 2 + 1
    pw = (ow + 2 - 3) // 2 + 1
    M1, M2 = N * oh * ow, N * ph * pw

    out_flat = pl.pallas_call(
        _make_fused_kernel(N, oh, ow, ph, pw, C),
        out_shape=jax.ShapeDtypeStruct((M2, C), jnp.float32),
        grid=(1,),
        in_specs=[
            pl.BlockSpec((M1, Kp), lambda i: (0, 0)),
            pl.BlockSpec((Kp, C), lambda i: (0, 0)),
            pl.BlockSpec((1, C), lambda i: (0, 0)),
            pl.BlockSpec((9, C, C), lambda i: (0, 0, 0)),
            pl.BlockSpec((1, C), lambda i: (0, 0)),
            pl.BlockSpec((9, C, C), lambda i: (0, 0, 0)),
        ],
        out_specs=pl.BlockSpec((M2, C), lambda i: (0, 0)),
    )(p1, w1p, b1p, w2p, b2p, w3p)

    out = out_flat[:, :oc].reshape(N, ph, pw, oc)
    return jnp.transpose(out, (0, 3, 1, 2))                       # NCHW


# ---------------------------------------------------------------------------
# Pure-JAX reference (for a built-in correctness check)
# ---------------------------------------------------------------------------

def _reference(x, w1, b1, w2, b2, w3):
    dn = ("NCHW", "OIHW", "NCHW")
    y = jax.lax.conv_general_dilated(x, w1, (2, 2), [(3, 3), (3, 3)],
                                     dimension_numbers=dn)
    y = y + b1[None, :, None, None]
    y = jax.lax.reduce_window(y, -jnp.inf, jax.lax.max, (1, 1, 3, 3),
                              (1, 1, 2, 2), [(0, 0), (0, 0), (1, 1), (1, 1)])
    ident = y
    y = jax.lax.conv_general_dilated(y, w2, (1, 1), [(1, 1), (1, 1)],
                                     dimension_numbers=dn)
    y = y + b2[None, :, None, None]
    y = jax.lax.conv_general_dilated(y, w3, (1, 1), [(1, 1), (1, 1)],
                                     dimension_numbers=dn)
    return y + ident


# ---------------------------------------------------------------------------
# Main
# ---------------------------------------------------------------------------

if __name__ == "__main__":
    key = jax.random.PRNGKey(0)
    ks = jax.random.split(key, 6)

    # Small shapes consistent with the module: N=2, C=3, H=W=16.
    x = jax.random.normal(ks[0], (2, 3, 16, 16), dtype=jnp.float32)
    w1 = jax.random.normal(ks[1], (64, 3, 7, 7), dtype=jnp.float32) * (2.0 / (3 * 49)) ** 0.5
    b1 = jax.random.normal(ks[2], (64,), dtype=jnp.float32) * 0.1
    w2 = jax.random.normal(ks[3], (64, 64, 3, 3), dtype=jnp.float32) * (2.0 / (64 * 9)) ** 0.5
    b2 = jax.random.normal(ks[4], (64,), dtype=jnp.float32) * 0.1
    w3 = jax.random.normal(ks[5], (64, 64, 3, 3), dtype=jnp.float32) * (2.0 / (64 * 9)) ** 0.5

    out = jax.block_until_ready(test_model0_forward(x, w1, b1, w2, b2, w3))
    assert out.shape == (2, 64, 4, 4), out.shape

    ref = jax.block_until_ready(_reference(x, w1, b1, w2, b2, w3))
    err = float(jnp.max(jnp.abs(out - ref)))
    assert err < 5e-2, f"max abs error vs reference: {err}"

    print("KERNEL_OK")
</pallas_src>

<mosaic_0001>
module attributes {stable_mosaic.version = 11 : i64} {
  func.func @kernel(%arg0: i32, %arg1: memref<128x256xf32, #tpu.memory_space<vmem>>, %arg2: memref<256x128xf32, #tpu.memory_space<vmem>>, %arg3: memref<1x128xf32, #tpu.memory_space<vmem>>, %arg4: memref<9x128x128xf32, #tpu.memory_space<vmem>>, %arg5: memref<1x128xf32, #tpu.memory_space<vmem>>, %arg6: memref<9x128x128xf32, #tpu.memory_space<vmem>>, %arg7: memref<32x128xf32, #tpu.memory_space<vmem>>) attributes {dimension_semantics = [#tpu.dimension_semantics<arbitrary>], iteration_bounds = array<i64: 1>, scalar_prefetch = 0 : i64, scratch_operands = 0 : i64, tpu.core_type = #tpu.core_type<tc>, window_params = [{pipeline_mode = #tpu.pipeline_mode<synchronous>, transform_indices = @transform_0, window_bounds = array<i64: 128, 256>}, {pipeline_mode = #tpu.pipeline_mode<synchronous>, transform_indices = @transform_1, window_bounds = array<i64: 256, 128>}, {pipeline_mode = #tpu.pipeline_mode<synchronous>, transform_indices = @transform_2, window_bounds = array<i64: 1, 128>}, {pipeline_mode = #tpu.pipeline_mode<synchronous>, transform_indices = @transform_3, window_bounds = array<i64: 9, 128, 128>}, {pipeline_mode = #tpu.pipeline_mode<synchronous>, transform_indices = @transform_4, window_bounds = array<i64: 1, 128>}, {pipeline_mode = #tpu.pipeline_mode<synchronous>, transform_indices = @transform_5, window_bounds = array<i64: 9, 128, 128>}, {pipeline_mode = #tpu.pipeline_mode<synchronous>, transform_indices = @transform_6, window_bounds = array<i64: 32, 128>}]} {
    %c0 = arith.constant 0 : index
    %c0_0 = arith.constant 0 : index
    %0 = vector.load %arg1[%c0, %c0_0] : memref<128x256xf32, #tpu.memory_space<vmem>>, vector<128x256xf32>
    %c0_1 = arith.constant 0 : index
    %c0_2 = arith.constant 0 : index
    %1 = vector.load %arg2[%c0_1, %c0_2] : memref<256x128xf32, #tpu.memory_space<vmem>>, vector<256x128xf32>
    %cst = arith.constant dense<0.000000e+00> : vector<128x128xf32>
    %2 = tpu.matmul %0, %1, %cst {dimension_numbers = #tpu.dot_dimension_numbers<[1], [0], [0], [1], [0, 0, 1, 1], [], []>} : vector<128x256xf32>, vector<256x128xf32>, vector<128x128xf32> -> vector<128x128xf32>
    %c0_3 = arith.constant 0 : index
    %c0_4 = arith.constant 0 : index
    %3 = vector.load %arg3[%c0_3, %c0_4] : memref<1x128xf32, #tpu.memory_space<vmem>>, vector<1x128xf32>
    %4 = vector.broadcast %3 : vector<1x128xf32> to vector<128x128xf32>
    %5 = arith.addf %2, %4 : vector<128x128xf32>
    %6 = vector.extract_strided_slice %5 {offsets = [0, 0], sizes = [8, 128], strides = [1, 1]} : vector<128x128xf32> to vector<8x128xf32>
    %7 = vector.extract_strided_slice %5 {offsets = [8, 0], sizes = [8, 128], strides = [1, 1]} : vector<128x128xf32> to vector<8x128xf32>
    %8 = arith.maximumf %6, %7 : vector<8x128xf32>
    %9 = vector.extract_strided_slice %8 {offsets = [0, 0], sizes = [1, 128], strides = [1, 1]} : vector<8x128xf32> to vector<1x128xf32>
    %10 = vector.extract_strided_slice %8 {offsets = [1, 0], sizes = [1, 128], strides = [1, 1]} : vector<8x128xf32> to vector<1x128xf32>
    %11 = arith.maximumf %9, %10 : vector<1x128xf32>
    %12 = vector.extract_strided_slice %8 {offsets = [1, 0], sizes = [1, 128], strides = [1, 1]} : vector<8x128xf32> to vector<1x128xf32>
    %13 = vector.extract_strided_slice %8 {offsets = [2, 0], sizes = [1, 128], strides = [1, 1]} : vector<8x128xf32> to vector<1x128xf32>
    %14 = arith.maximumf %12, %13 : vector<1x128xf32>
    %15 = vector.extract_strided_slice %8 {offsets = [3, 0], sizes = [1, 128], strides = [1, 1]} : vector<8x128xf32> to vector<1x128xf32>
    %16 = arith.maximumf %14, %15 : vector<1x128xf32>
    %17 = vector.extract_strided_slice %8 {offsets = [3, 0], sizes = [1, 128], strides = [1, 1]} : vector<8x128xf32> to vector<1x128xf32>
    %18 = vector.extract_strided_slice %8 {offsets = [4, 0], sizes = [1, 128], strides = [1, 1]} : vector<8x128xf32> to vector<1x128xf32>
    %19 = arith.maximumf %17, %18 : vector<1x128xf32>
    %20 = vector.extract_strided_slice %8 {offsets = [5, 0], sizes = [1, 128], strides = [1, 1]} : vector<8x128xf32> to vector<1x128xf32>
    %21 = arith.maximumf %19, %20 : vector<1x128xf32>
    %22 = vector.extract_strided_slice %8 {offsets = [5, 0], sizes = [1, 128], strides = [1, 1]} : vector<8x128xf32> to vector<1x128xf32>
    %23 = vector.extract_strided_slice %8 {offsets = [6, 0], sizes = [1, 128], strides = [1, 1]} : vector<8x128xf32> to vector<1x128xf32>
    %24 = arith.maximumf %22, %23 : vector<1x128xf32>
    %25 = vector.extract_strided_slice %8 {offsets = [7, 0], sizes = [1, 128], strides = [1, 1]} : vector<8x128xf32> to vector<1x128xf32>
    %26 = arith.maximumf %24, %25 : vector<1x128xf32>
    %27 = tpu.concatenate %11, %16, %21, %26 in 0 : vector<1x128xf32>, vector<1x128xf32>, vector<1x128xf32>, vector<1x128xf32> -> vector<4x128xf32>
    %28 = vector.extract_strided_slice %5 {offsets = [8, 0], sizes = [8, 128], strides = [1, 1]} : vector<128x128xf32> to vector<8x128xf32>
    %29 = vector.extract_strided_slice %5 {offsets = [16, 0], sizes = [8, 128], strides = [1, 1]} : vector<128x128xf32> to vector<8x128xf32>
    %30 = arith.maximumf %28, %29 : vector<8x128xf32>
    %31 = vector.extract_strided_slice %5 {offsets = [24, 0], sizes = [8, 128], strides = [1, 1]} : vector<128x128xf32> to vector<8x128xf32>
    %32 = arith.maximumf %30, %31 : vector<8x128xf32>
    %33 = vector.extract_strided_slice %32 {offsets = [0, 0], sizes = [1, 128], strides = [1, 1]} : vector<8x128xf32> to vector<1x128xf32>
    %34 = vector.extract_strided_slice %32 {offsets = [1, 0], sizes = [1, 128], strides = [1, 1]} : vector<8x128xf32> to vector<1x128xf32>
    %35 = arith.maximumf %33, %34 : vector<1x128xf32>
    %36 = vector.extract_strided_slice %32 {offsets = [1, 0], sizes = [1, 128], strides = [1, 1]} : vector<8x128xf32> to vector<1x128xf32>
    %37 = vector.extract_strided_slice %32 {offsets = [2, 0], sizes = [1, 128], strides = [1, 1]} : vector<8x128xf32> to vector<1x128xf32>
    %38 = arith.maximumf %36, %37 : vector<1x128xf32>
    %39 = vector.extract_strided_slice %32 {offsets = [3, 0], sizes = [1, 128], strides = [1, 1]} : vector<8x128xf32> to vector<1x128xf32>
    %40 = arith.maximumf %38, %39 : vector<1x128xf32>
    %41 = vector.extract_strided_slice %32 {offsets = [3, 0], sizes = [1, 128], strides = [1, 1]} : vector<8x128xf32> to vector<1x128xf32>
    %42 = vector.extract_strided_slice %32 {offsets = [4, 0], sizes = [1, 128], strides = [1, 1]} : vector<8x128xf32> to vector<1x128xf32>
    %43 = arith.maximumf %41, %42 : vector<1x128xf32>
    %44 = vector.extract_strided_slice %32 {offsets = [5, 0], sizes = [1, 128], strides = [1, 1]} : vector<8x128xf32> to vector<1x128xf32>
    %45 = arith.maximumf %43, %44 : vector<1x128xf32>
    %46 = vector.extract_strided_slice %32 {offsets = [5, 0], sizes = [1, 128], strides = [1, 1]} : vector<8x128xf32> to vector<1x128xf32>
    %47 = vector.extract_strided_slice %32 {offsets = [6, 0], sizes = [1, 128], strides = [1, 1]} : vector<8x128xf32> to vector<1x128xf32>
    %48 = arith.maximumf %46, %47 : vector<1x128xf32>
    %49 = vector.extract_strided_slice %32 {offsets = [7, 0], sizes = [1, 128], strides = [1, 1]} : vector<8x128xf32> to vector<1x128xf32>
    %50 = arith.maximumf %48, %49 : vector<1x128xf32>
    %51 = tpu.concatenate %35, %40, %45, %50 in 0 : vector<1x128xf32>, vector<1x128xf32>, vector<1x128xf32>, vector<1x128xf32> -> vector<4x128xf32>
    %52 = vector.extract_strided_slice %5 {offsets = [24, 0], sizes = [8, 128], strides = [1, 1]} : vector<128x128xf32> to vector<8x128xf32>
    %53 = vector.extract_strided_slice %5 {offsets = [32, 0], sizes = [8, 128], strides = [1, 1]} : vector<128x128xf32> to vector<8x128xf32>
    %54 = arith.maximumf %52, %53 : vector<8x128xf32>
    %55 = vector.extract_strided_slice %5 {offsets = [40, 0], sizes = [8, 128], strides = [1, 1]} : vector<128x128xf32> to vector<8x128xf32>
    %56 = arith.maximumf %54, %55 : vector<8x128xf32>
    %57 = vector.extract_strided_slice %56 {offsets = [0, 0], sizes = [1, 128], strides = [1, 1]} : vector<8x128xf32> to vector<1x128xf32>
    %58 = vector.extract_strided_slice %56 {offsets = [1, 0], sizes = [1, 128], strides = [1, 1]} : vector<8x128xf32> to vector<1x128xf32>
    %59 = arith.maximumf %57, %58 : vector<1x128xf32>
    %60 = vector.extract_strided_slice %56 {offsets = [1, 0], sizes = [1, 128], strides = [1, 1]} : vector<8x128xf32> to vector<1x128xf32>
    %61 = vector.extract_strided_slice %56 {offsets = [2, 0], sizes = [1, 128], strides = [1, 1]} : vector<8x128xf32> to vector<1x128xf32>
    %62 = arith.maximumf %60, %61 : vector<1x128xf32>
    %63 = vector.extract_strided_slice %56 {offsets = [3, 0], sizes = [1, 128], strides = [1, 1]} : vector<8x128xf32> to vector<1x128xf32>
    %64 = arith.maximumf %62, %63 : vector<1x128xf32>
    %65 = vector.extract_strided_slice %56 {offsets = [3, 0], sizes = [1, 128], strides = [1, 1]} : vector<8x128xf32> to vector<1x128xf32>
    %66 = vector.extract_strided_slice %56 {offsets = [4, 0], sizes = [1, 128], strides = [1, 1]} : vector<8x128xf32> to vector<1x128xf32>
    %67 = arith.maximumf %65, %66 : vector<1x128xf32>
    %68 = vector.extract_strided_slice %56 {offsets = [5, 0], sizes = [1, 128], strides = [1, 1]} : vector<8x128xf32> to vector<1x128xf32>
    %69 = arith.maximumf %67, %68 : vector<1x128xf32>
    %70 = vector.extract_strided_slice %56 {offsets = [5, 0], sizes = [1, 128], strides = [1, 1]} : vector<8x128xf32> to vector<1x128xf32>
    %71 = vector.extract_strided_slice %56 {offsets = [6, 0], sizes = [1, 128], strides = [1, 1]} : vector<8x128xf32> to vector<1x128xf32>
    %72 = arith.maximumf %70, %71 : vector<1x128xf32>
    %73 = vector.extract_strided_slice %56 {offsets = [7, 0], sizes = [1, 128], strides = [1, 1]} : vector<8x128xf32> to vector<1x128xf32>
    %74 = arith.maximumf %72, %73 : vector<1x128xf32>
    %75 = tpu.concatenate %59, %64, %69, %74 in 0 : vector<1x128xf32>, vector<1x128xf32>, vector<1x128xf32>, vector<1x128xf32> -> vector<4x128xf32>
    %76 = vector.extract_strided_slice %5 {offsets = [40, 0], sizes = [8, 128], strides = [1, 1]} : vector<128x128xf32> to vector<8x128xf32>
    %77 = vector.extract_strided_slice %5 {offsets = [48, 0], sizes = [8, 128], strides = [1, 1]} : vector<128x128xf32> to vector<8x128xf32>
    %78 = arith.maximumf %76, %77 : vector<8x128xf32>
    %79 = vector.extract_strided_slice %5 {offsets = [56, 0], sizes = [8, 128], strides = [1, 1]} : vector<128x128xf32> to vector<8x128xf32>
    %80 = arith.maximumf %78, %79 : vector<8x128xf32>
    %81 = vector.extract_strided_slice %80 {offsets = [0, 0], sizes = [1, 128], strides = [1, 1]} : vector<8x128xf32> to vector<1x128xf32>
    %82 = vector.extract_strided_slice %80 {offsets = [1, 0], sizes = [1, 128], strides = [1, 1]} : vector<8x128xf32> to vector<1x128xf32>
    %83 = arith.maximumf %81, %82 : vector<1x128xf32>
    %84 = vector.extract_strided_slice %80 {offsets = [1, 0], sizes = [1, 128], strides = [1, 1]} : vector<8x128xf32> to vector<1x128xf32>
    %85 = vector.extract_strided_slice %80 {offsets = [2, 0], sizes = [1, 128], strides = [1, 1]} : vector<8x128xf32> to vector<1x128xf32>
    %86 = arith.maximumf %84, %85 : vector<1x128xf32>
    %87 = vector.extract_strided_slice %80 {offsets = [3, 0], sizes = [1, 128], strides = [1, 1]} : vector<8x128xf32> to vector<1x128xf32>
    %88 = arith.maximumf %86, %87 : vector<1x128xf32>
    %89 = vector.extract_strided_slice %80 {offsets = [3, 0], sizes = [1, 128], strides = [1, 1]} : vector<8x128xf32> to vector<1x128xf32>
    %90 = vector.extract_strided_slice %80 {offsets = [4, 0], sizes = [1, 128], strides = [1, 1]} : vector<8x128xf32> to vector<1x128xf32>
    %91 = arith.maximumf %89, %90 : vector<1x128xf32>
    %92 = vector.extract_strided_slice %80 {offsets = [5, 0], sizes = [1, 128], strides = [1, 1]} : vector<8x128xf32> to vector<1x128xf32>
    %93 = arith.maximumf %91, %92 : vector<1x128xf32>
    %94 = vector.extract_strided_slice %80 {offsets = [5, 0], sizes = [1, 128], strides = [1, 1]} : vector<8x128xf32> to vector<1x128xf32>
    %95 = vector.extract_strided_slice %80 {offsets = [6, 0], sizes = [1, 128], strides = [1, 1]} : vector<8x128xf32> to vector<1x128xf32>
    %96 = arith.maximumf %94, %95 : vector<1x128xf32>
    %97 = vector.extract_strided_slice %80 {offsets = [7, 0], sizes = [1, 128], strides = [1, 1]} : vector<8x128xf32> to vector<1x128xf32>
    %98 = arith.maximumf %96, %97 : vector<1x128xf32>
    %99 = tpu.concatenate %83, %88, %93, %98 in 0 : vector<1x128xf32>, vector<1x128xf32>, vector<1x128xf32>, vector<1x128xf32> -> vector<4x128xf32>
    %100 = vector.extract_strided_slice %5 {offsets = [64, 0], sizes = [8, 128], strides = [1, 1]} : vector<128x128xf32> to vector<8x128xf32>
    %101 = vector.extract_strided_slice %5 {offsets = [72, 0], sizes = [8, 128], strides = [1, 1]} : vector<128x128xf32> to vector<8x128xf32>
    %102 = arith.maximumf %100, %101 : vector<8x128xf32>
    %103 = vector.extract_strided_slice %102 {offsets = [0, 0], sizes = [1, 128], strides = [1, 1]} : vector<8x128xf32> to vector<1x128xf32>
    %104 = vector.extract_strided_slice %102 {offsets = [1, 0], sizes = [1, 128], strides = [1, 1]} : vector<8x128xf32> to vector<1x128xf32>
    %105 = arith.maximumf %103, %104 : vector<1x128xf32>
    %106 = vector.extract_strided_slice %102 {offsets = [1, 0], sizes = [1, 128], strides = [1, 1]} : vector<8x128xf32> to vector<1x128xf32>
    %107 = vector.extract_strided_slice %102 {offsets = [2, 0], sizes = [1, 128], strides = [1, 1]} : vector<8x128xf32> to vector<1x128xf32>
    %108 = arith.maximumf %106, %107 : vector<1x128xf32>
    %109 = vector.extract_strided_slice %102 {offsets = [3, 0], sizes = [1, 128], strides = [1, 1]} : vector<8x128xf32> to vector<1x128xf32>
    %110 = arith.maximumf %108, %109 : vector<1x128xf32>
    %111 = vector.extract_strided_slice %102 {offsets = [3, 0], sizes = [1, 128], strides = [1, 1]} : vector<8x128xf32> to vector<1x128xf32>
    %112 = vector.extract_strided_slice %102 {offsets = [4, 0], sizes = [1, 128], strides = [1, 1]} : vector<8x128xf32> to vector<1x128xf32>
    %113 = arith.maximumf %111, %112 : vector<1x128xf32>
    %114 = vector.extract_strided_slice %102 {offsets = [5, 0], sizes = [1, 128], strides = [1, 1]} : vector<8x128xf32> to vector<1x128xf32>
    %115 = arith.maximumf %113, %114 : vector<1x128xf32>
    %116 = vector.extract_strided_slice %102 {offsets = [5, 0], sizes = [1, 128], strides = [1, 1]} : vector<8x128xf32> to vector<1x128xf32>
    %117 = vector.extract_strided_slice %102 {offsets = [6, 0], sizes = [1, 128], strides = [1, 1]} : vector<8x128xf32> to vector<1x128xf32>
    %118 = arith.maximumf %116, %117 : vector<1x128xf32>
    %119 = vector.extract_strided_slice %102 {offsets = [7, 0], sizes = [1, 128], strides = [1, 1]} : vector<8x128xf32> to vector<1x128xf32>
    %120 = arith.maximumf %118, %119 : vector<1x128xf32>
    %121 = tpu.concatenate %105, %110, %115, %120 in 0 : vector<1x128xf32>, vector<1x128xf32>, vector<1x128xf32>, vector<1x128xf32> -> vector<4x128xf32>
    %122 = vector.extract_strided_slice %5 {offsets = [72, 0], sizes = [8, 128], strides = [1, 1]} : vector<128x128xf32> to vector<8x128xf32>
    %123 = vector.extract_strided_slice %5 {offsets = [80, 0], sizes = [8, 128], strides = [1, 1]} : vector<128x128xf32> to vector<8x128xf32>
    %124 = arith.maximumf %122, %123 : vector<8x128xf32>
    %125 = vector.extract_strided_slice %5 {offsets = [88, 0], sizes = [8, 128], strides = [1, 1]} : vector<128x128xf32> to vector<8x128xf32>
    %126 = arith.maximumf %124, %125 : vector<8x128xf32>
    %127 = vector.extract_strided_slice %126 {offsets = [0, 0], sizes = [1, 128], strides = [1, 1]} : vector<8x128xf32> to vector<1x128xf32>
    %128 = vector.extract_strided_slice %126 {offsets = [1, 0], sizes = [1, 128], strides = [1, 1]} : vector<8x128xf32> to vector<1x128xf32>
    %129 = arith.maximumf %127, %128 : vector<1x128xf32>
    %130 = vector.extract_strided_slice %126 {offsets = [1, 0], sizes = [1, 128], strides = [1, 1]} : vector<8x128xf32> to vector<1x128xf32>
    %131 = vector.extract_strided_slice %126 {offsets = [2, 0], sizes = [1, 128], strides = [1, 1]} : vector<8x128xf32> to vector<1x128xf32>
    %132 = arith.maximumf %130, %131 : vector<1x128xf32>
    %133 = vector.extract_strided_slice %126 {offsets = [3, 0], sizes = [1, 128], strides = [1, 1]} : vector<8x128xf32> to vector<1x128xf32>
    %134 = arith.maximumf %132, %133 : vector<1x128xf32>
    %135 = vector.extract_strided_slice %126 {offsets = [3, 0], sizes = [1, 128], strides = [1, 1]} : vector<8x128xf32> to vector<1x128xf32>
    %136 = vector.extract_strided_slice %126 {offsets = [4, 0], sizes = [1, 128], strides = [1, 1]} : vector<8x128xf32> to vector<1x128xf32>
    %137 = arith.maximumf %135, %136 : vector<1x128xf32>
    %138 = vector.extract_strided_slice %126 {offsets = [5, 0], sizes = [1, 128], strides = [1, 1]} : vector<8x128xf32> to vector<1x128xf32>
    %139 = arith.maximumf %137, %138 : vector<1x128xf32>
    %140 = vector.extract_strided_slice %126 {offsets = [5, 0], sizes = [1, 128], strides = [1, 1]} : vector<8x128xf32> to vector<1x128xf32>
    %141 = vector.extract_strided_slice %126 {offsets = [6, 0], sizes = [1, 128], strides = [1, 1]} : vector<8x128xf32> to vector<1x128xf32>
    %142 = arith.maximumf %140, %141 : vector<1x128xf32>
    %143 = vector.extract_strided_slice %126 {offsets = [7, 0], sizes = [1, 128], strides = [1, 1]} : vector<8x128xf32> to vector<1x128xf32>
    %144 = arith.maximumf %142, %143 : vector<1x128xf32>
    %145 = tpu.concatenate %129, %134, %139, %144 in 0 : vector<1x128xf32>, vector<1x128xf32>, vector<1x128xf32>, vector<1x128xf32> -> vector<4x128xf32>
    %146 = vector.extract_strided_slice %5 {offsets = [88, 0], sizes = [8, 128], strides = [1, 1]} : vector<128x128xf32> to vector<8x128xf32>
    %147 = vector.extract_strided_slice %5 {offsets = [96, 0], sizes = [8, 128], strides = [1, 1]} : vector<128x128xf32> to vector<8x128xf32>
    %148 = arith.maximumf %146, %147 : vector<8x128xf32>
    %149 = vector.extract_strided_slice %5 {offsets = [104, 0], sizes = [8, 128], strides = [1, 1]} : vector<128x128xf32> to vector<8x128xf32>
    %150 = arith.maximumf %148, %149 : vector<8x128xf32>
    %151 = vector.extract_strided_slice %150 {offsets = [0, 0], sizes = [1, 128], strides = [1, 1]} : vector<8x128xf32> to vector<1x128xf32>
    %152 = vector.extract_strided_slice %150 {offsets = [1, 0], sizes = [1, 128], strides = [1, 1]} : vector<8x128xf32> to vector<1x128xf32>
    %153 = arith.maximumf %151, %152 : vector<1x128xf32>
    %154 = vector.extract_strided_slice %150 {offsets = [1, 0], sizes = [1, 128], strides = [1, 1]} : vector<8x128xf32> to vector<1x128xf32>
    %155 = vector.extract_strided_slice %150 {offsets = [2, 0], sizes = [1, 128], strides = [1, 1]} : vector<8x128xf32> to vector<1x128xf32>
    %156 = arith.maximumf %154, %155 : vector<1x128xf32>
    %157 = vector.extract_strided_slice %150 {offsets = [3, 0], sizes = [1, 128], strides = [1, 1]} : vector<8x128xf32> to vector<1x128xf32>
    %158 = arith.maximumf %156, %157 : vector<1x128xf32>
    %159 = vector.extract_strided_slice %150 {offsets = [3, 0], sizes = [1, 128], strides = [1, 1]} : vector<8x128xf32> to vector<1x128xf32>
    %160 = vector.extract_strided_slice %150 {offsets = [4, 0], sizes = [1, 128], strides = [1, 1]} : vector<8x128xf32> to vector<1x128xf32>
    %161 = arith.maximumf %159, %160 : vector<1x128xf32>
    %162 = vector.extract_strided_slice %150 {offsets = [5, 0], sizes = [1, 128], strides = [1, 1]} : vector<8x128xf32> to vector<1x128xf32>
    %163 = arith.maximumf %161, %162 : vector<1x128xf32>
    %164 = vector.extract_strided_slice %150 {offsets = [5, 0], sizes = [1, 128], strides = [1, 1]} : vector<8x128xf32> to vector<1x128xf32>
    %165 = vector.extract_strided_slice %150 {offsets = [6, 0], sizes = [1, 128], strides = [1, 1]} : vector<8x128xf32> to vector<1x128xf32>
    %166 = arith.maximumf %164, %165 : vector<1x128xf32>
    %167 = vector.extract_strided_slice %150 {offsets = [7, 0], sizes = [1, 128], strides = [1, 1]} : vector<8x128xf32> to vector<1x128xf32>
    %168 = arith.maximumf %166, %167 : vector<1x128xf32>
    %169 = tpu.concatenate %153, %158, %163, %168 in 0 : vector<1x128xf32>, vector<1x128xf32>, vector<1x128xf32>, vector<1x128xf32> -> vector<4x128xf32>
    %170 = vector.extract_strided_slice %5 {offsets = [104, 0], sizes = [8, 128], strides = [1, 1]} : vector<128x128xf32> to vector<8x128xf32>
    %171 = vector.extract_strided_slice %5 {offsets = [112, 0], sizes = [8, 128], strides = [1, 1]} : vector<128x128xf32> to vector<8x128xf32>
    %172 = arith.maximumf %170, %171 : vector<8x128xf32>
    %173 = vector.extract_strided_slice %5 {offsets = [120, 0], sizes = [8, 128], strides = [1, 1]} : vector<128x128xf32> to vector<8x128xf32>
    %174 = arith.maximumf %172, %173 : vector<8x128xf32>
    %175 = vector.extract_strided_slice %174 {offsets = [0, 0], sizes = [1, 128], strides = [1, 1]} : vector<8x128xf32> to vector<1x128xf32>
    %176 = vector.extract_strided_slice %174 {offsets = [1, 0], sizes = [1, 128], strides = [1, 1]} : vector<8x128xf32> to vector<1x128xf32>
    %177 = arith.maximumf %175, %176 : vector<1x128xf32>
    %178 = vector.extract_strided_slice %174 {offsets = [1, 0], sizes = [1, 128], strides = [1, 1]} : vector<8x128xf32> to vector<1x128xf32>
    %179 = vector.extract_strided_slice %174 {offsets = [2, 0], sizes = [1, 128], strides = [1, 1]} : vector<8x128xf32> to vector<1x128xf32>
    %180 = arith.maximumf %178, %179 : vector<1x128xf32>
    %181 = vector.extract_strided_slice %174 {offsets = [3, 0], sizes = [1, 128], strides = [1, 1]} : vector<8x128xf32> to vector<1x128xf32>
    %182 = arith.maximumf %180, %181 : vector<1x128xf32>
    %183 = vector.extract_strided_slice %174 {offsets = [3, 0], sizes = [1, 128], strides = [1, 1]} : vector<8x128xf32> to vector<1x128xf32>
    %184 = vector.extract_strided_slice %174 {offsets = [4, 0], sizes = [1, 128], strides = [1, 1]} : vector<8x128xf32> to vector<1x128xf32>
    %185 = arith.maximumf %183, %184 : vector<1x128xf32>
    %186 = vector.extract_strided_slice %174 {offsets = [5, 0], sizes = [1, 128], strides = [1, 1]} : vector<8x128xf32> to vector<1x128xf32>
    %187 = arith.maximumf %185, %186 : vector<1x128xf32>
    %188 = vector.extract_strided_slice %174 {offsets = [5, 0], sizes = [1, 128], strides = [1, 1]} : vector<8x128xf32> to vector<1x128xf32>
    %189 = vector.extract_strided_slice %174 {offsets = [6, 0], sizes = [1, 128], strides = [1, 1]} : vector<8x128xf32> to vector<1x128xf32>
    %190 = arith.maximumf %188, %189 : vector<1x128xf32>
    %191 = vector.extract_strided_slice %174 {offsets = [7, 0], sizes = [1, 128], strides = [1, 1]} : vector<8x128xf32> to vector<1x128xf32>
    %192 = arith.maximumf %190, %191 : vector<1x128xf32>
    %193 = tpu.concatenate %177, %182, %187, %192 in 0 : vector<1x128xf32>, vector<1x128xf32>, vector<1x128xf32>, vector<1x128xf32> -> vector<4x128xf32>
    %194 = tpu.concatenate %27, %51, %75, %99, %121, %145, %169, %193 in 0 : vector<4x128xf32>, vector<4x128xf32>, vector<4x128xf32>, vector<4x128xf32>, vector<4x128xf32>, vector<4x128xf32>, vector<4x128xf32>, vector<4x128xf32> -> vector<32x128xf32>
    %195 = tpu.iota {dimensions = array<i32: 0>} : vector<32x128xi32>
    %c3_i32 = arith.constant 3 : i32
    %196 = vector.broadcast %c3_i32 : i32 to vector<32x128xi32>
    %197 = arith.andi %195, %196 : vector<32x128xi32>
    %c2_i32 = arith.constant 2 : i32
    %198 = vector.broadcast %c2_i32 : i32 to vector<32x128xi32>
    %199 = arith.shrsi %195, %198 : vector<32x128xi32>
    %c3_i32_5 = arith.constant 3 : i32
    %200 = vector.broadcast %c3_i32_5 : i32 to vector<32x128xi32>
    %201 = arith.andi %199, %200 : vector<32x128xi32>
    %c0_6 = arith.constant 0 : index
    %c0_7 = arith.constant 0 : index
    %202 = vector.load %arg5[%c0_6, %c0_7] : memref<1x128xf32, #tpu.memory_space<vmem>>, vector<1x128xf32>
    %cst_8 = arith.constant 0.000000e+00 : f32
    %203 = vector.broadcast %cst_8 : f32 to vector<32x128xf32>
    %cst_9 = arith.constant 0.000000e+00 : f32
    %204 = vector.broadcast %cst_9 : f32 to vector<5x128xf32>
    %205 = vector.extract_strided_slice %194 {offsets = [0, 0], sizes = [27, 128], strides = [1, 1]} : vector<32x128xf32> to vector<27x128xf32>
    %206 = tpu.concatenate %204, %205 in 0 : vector<5x128xf32>, vector<27x128xf32> -> vector<32x128xf32>
    %c1_i32 = arith.constant 1 : i32
    %207 = vector.broadcast %c1_i32 : i32 to vector<32x128xi32>
    %208 = arith.cmpi sge, %201, %207 : vector<32x128xi32>
    %c1_i32_10 = arith.constant 1 : i32
    %209 = vector.broadcast %c1_i32_10 : i32 to vector<32x128xi32>
    %210 = arith.cmpi sge, %197, %209 : vector<32x128xi32>
    %211 = arith.andi %208, %210 : vector<32x128xi1>
    %cst_11 = arith.constant 0.000000e+00 : f32
    %212 = vector.broadcast %cst_11 : f32 to vector<32x128xf32>
    %213 = arith.select %211, %206, %212 : vector<32x128xi1>, vector<32x128xf32>
    %c0_12 = arith.constant 0 : index
    %c0_13 = arith.constant 0 : index
    %c0_14 = arith.constant 0 : index
    %214 = vector.load %arg4[%c0_12, %c0_13, %c0_14] : memref<9x128x128xf32, #tpu.memory_space<vmem>>, vector<1x128x128xf32>
    %215 = vector.shape_cast %214 : vector<1x128x128xf32> to vector<128x128xf32>
    %cst_15 = arith.constant dense<0.000000e+00> : vector<32x128xf32>
    %216 = tpu.matmul %213, %215, %cst_15 {dimension_numbers = #tpu.dot_dimension_numbers<[1], [0], [0], [1], [0, 0, 1, 1], [], []>} : vector<32x128xf32>, vector<128x128xf32>, vector<32x128xf32> -> vector<32x128xf32>
    %217 = arith.addf %203, %216 : vector<32x128xf32>
    %cst_16 = arith.constant 0.000000e+00 : f32
    %218 = vector.broadcast %cst_16 : f32 to vector<4x128xf32>
    %219 = vector.extract_strided_slice %194 {offsets = [0, 0], sizes = [28, 128], strides = [1, 1]} : vector<32x128xf32> to vector<28x128xf32>
    %220 = tpu.concatenate %218, %219 in 0 : vector<4x128xf32>, vector<28x128xf32> -> vector<32x128xf32>
    %c1_i32_17 = arith.constant 1 : i32
    %221 = vector.broadcast %c1_i32_17 : i32 to vector<32x128xi32>
    %222 = arith.cmpi sge, %201, %221 : vector<32x128xi32>
    %cst_18 = arith.constant 0.000000e+00 : f32
    %223 = vector.broadcast %cst_18 : f32 to vector<32x128xf32>
    %224 = arith.select %222, %220, %223 : vector<32x128xi1>, vector<32x128xf32>
    %c1 = arith.constant 1 : index
    %c0_19 = arith.constant 0 : index
    %c0_20 = arith.constant 0 : index
    %225 = vector.load %arg4[%c1, %c0_19, %c0_20] : memref<9x128x128xf32, #tpu.memory_space<vmem>>, vector<1x128x128xf32>
    %226 = vector.shape_cast %225 : vector<1x128x128xf32> to vector<128x128xf32>
    %cst_21 = arith.constant dense<0.000000e+00> : vector<32x128xf32>
    %227 = tpu.matmul %224, %226, %cst_21 {dimension_numbers = #tpu.dot_dimension_numbers<[1], [0], [0], [1], [0, 0, 1, 1], [], []>} : vector<32x128xf32>, vector<128x128xf32>, vector<32x128xf32> -> vector<32x128xf32>
    %228 = arith.addf %217, %227 : vector<32x128xf32>
    %cst_22 = arith.constant 0.000000e+00 : f32
    %229 = vector.broadcast %cst_22 : f32 to vector<3x128xf32>
    %230 = vector.extract_strided_slice %194 {offsets = [0, 0], sizes = [29, 128], strides = [1, 1]} : vector<32x128xf32> to vector<29x128xf32>
    %231 = tpu.concatenate %229, %230 in 0 : vector<3x128xf32>, vector<29x128xf32> -> vector<32x128xf32>
    %c1_i32_23 = arith.constant 1 : i32
    %232 = vector.broadcast %c1_i32_23 : i32 to vector<32x128xi32>
    %233 = arith.cmpi sge, %201, %232 : vector<32x128xi32>
    %c3_i32_24 = arith.constant 3 : i32
    %234 = vector.broadcast %c3_i32_24 : i32 to vector<32x128xi32>
    %235 = arith.cmpi slt, %197, %234 : vector<32x128xi32>
    %236 = arith.andi %233, %235 : vector<32x128xi1>
    %cst_25 = arith.constant 0.000000e+00 : f32
    %237 = vector.broadcast %cst_25 : f32 to vector<32x128xf32>
    %238 = arith.select %236, %231, %237 : vector<32x128xi1>, vector<32x128xf32>
    %c2 = arith.constant 2 : index
    %c0_26 = arith.constant 0 : index
    %c0_27 = arith.constant 0 : index
    %239 = vector.load %arg4[%c2, %c0_26, %c0_27] : memref<9x128x128xf32, #tpu.memory_space<vmem>>, vector<1x128x128xf32>
    %240 = vector.shape_cast %239 : vector<1x128x128xf32> to vector<128x128xf32>
    %cst_28 = arith.constant dense<0.000000e+00> : vector<32x128xf32>
    %241 = tpu.matmul %238, %240, %cst_28 {dimension_numbers = #tpu.dot_dimension_numbers<[1], [0], [0], [1], [0, 0, 1, 1], [], []>} : vector<32x128xf32>, vector<128x128xf32>, vector<32x128xf32> -> vector<32x128xf32>
    %242 = arith.addf %228, %241 : vector<32x128xf32>
    %cst_29 = arith.constant 0.000000e+00 : f32
    %243 = vector.broadcast %cst_29 : f32 to vector<1x128xf32>
    %244 = vector.extract_strided_slice %194 {offsets = [0, 0], sizes = [31, 128], strides = [1, 1]} : vector<32x128xf32> to vector<31x128xf32>
    %245 = tpu.concatenate %243, %244 in 0 : vector<1x128xf32>, vector<31x128xf32> -> vector<32x128xf32>
    %c1_i32_30 = arith.constant 1 : i32
    %246 = vector.broadcast %c1_i32_30 : i32 to vector<32x128xi32>
    %247 = arith.cmpi sge, %197, %246 : vector<32x128xi32>
    %cst_31 = arith.constant 0.000000e+00 : f32
    %248 = vector.broadcast %cst_31 : f32 to vector<32x128xf32>
    %249 = arith.select %247, %245, %248 : vector<32x128xi1>, vector<32x128xf32>
    %c3 = arith.constant 3 : index
    %c0_32 = arith.constant 0 : index
    %c0_33 = arith.constant 0 : index
    %250 = vector.load %arg4[%c3, %c0_32, %c0_33] : memref<9x128x128xf32, #tpu.memory_space<vmem>>, vector<1x128x128xf32>
    %251 = vector.shape_cast %250 : vector<1x128x128xf32> to vector<128x128xf32>
    %cst_34 = arith.constant dense<0.000000e+00> : vector<32x128xf32>
    %252 = tpu.matmul %249, %251, %cst_34 {dimension_numbers = #tpu.dot_dimension_numbers<[1], [0], [0], [1], [0, 0, 1, 1], [], []>} : vector<32x128xf32>, vector<128x128xf32>, vector<32x128xf32> -> vector<32x128xf32>
    %253 = arith.addf %242, %252 : vector<32x128xf32>
    %c4 = arith.constant 4 : index
    %c0_35 = arith.constant 0 : index
    %c0_36 = arith.constant 0 : index
    %254 = vector.load %arg4[%c4, %c0_35, %c0_36] : memref<9x128x128xf32, #tpu.memory_space<vmem>>, vector<1x128x128xf32>
    %255 = vector.shape_cast %254 : vector<1x128x128xf32> to vector<128x128xf32>
    %cst_37 = arith.constant dense<0.000000e+00> : vector<32x128xf32>
    %256 = tpu.matmul %194, %255, %cst_37 {dimension_numbers = #tpu.dot_dimension_numbers<[1], [0], [0], [1], [0, 0, 1, 1], [], []>} : vector<32x128xf32>, vector<128x128xf32>, vector<32x128xf32> -> vector<32x128xf32>
    %257 = arith.addf %253, %256 : vector<32x128xf32>
    %258 = vector.extract_strided_slice %194 {offsets = [1, 0], sizes = [31, 128], strides = [1, 1]} : vector<32x128xf32> to vector<31x128xf32>
    %cst_38 = arith.constant 0.000000e+00 : f32
    %259 = vector.broadcast %cst_38 : f32 to vector<1x128xf32>
    %260 = tpu.concatenate %258, %259 in 0 : vector<31x128xf32>, vector<1x128xf32> -> vector<32x128xf32>
    %c3_i32_39 = arith.constant 3 : i32
    %261 = vector.broadcast %c3_i32_39 : i32 to vector<32x128xi32>
    %262 = arith.cmpi slt, %197, %261 : vector<32x128xi32>
    %cst_40 = arith.constant 0.000000e+00 : f32
    %263 = vector.broadcast %cst_40 : f32 to vector<32x128xf32>
    %264 = arith.select %262, %260, %263 : vector<32x128xi1>, vector<32x128xf32>
    %c5 = arith.constant 5 : index
    %c0_41 = arith.constant 0 : index
    %c0_42 = arith.constant 0 : index
    %265 = vector.load %arg4[%c5, %c0_41, %c0_42] : memref<9x128x128xf32, #tpu.memory_space<vmem>>, vector<1x128x128xf32>
    %266 = vector.shape_cast %265 : vector<1x128x128xf32> to vector<128x128xf32>
    %cst_43 = arith.constant dense<0.000000e+00> : vector<32x128xf32>
    %267 = tpu.matmul %264, %266, %cst_43 {dimension_numbers = #tpu.dot_dimension_numbers<[1], [0], [0], [1], [0, 0, 1, 1], [], []>} : vector<32x128xf32>, vector<128x128xf32>, vector<32x128xf32> -> vector<32x128xf32>
    %268 = arith.addf %257, %267 : vector<32x128xf32>
    %269 = vector.extract_strided_slice %194 {offsets = [3, 0], sizes = [29, 128], strides = [1, 1]} : vector<32x128xf32> to vector<29x128xf32>
    %cst_44 = arith.constant 0.000000e+00 : f32
    %270 = vector.broadcast %cst_44 : f32 to vector<3x128xf32>
    %271 = tpu.concatenate %269, %270 in 0 : vector<29x128xf32>, vector<3x128xf32> -> vector<32x128xf32>
    %c3_i32_45 = arith.constant 3 : i32
    %272 = vector.broadcast %c3_i32_45 : i32 to vector<32x128xi32>
    %273 = arith.cmpi slt, %201, %272 : vector<32x128xi32>
    %c1_i32_46 = arith.constant 1 : i32
    %274 = vector.broadcast %c1_i32_46 : i32 to vector<32x128xi32>
    %275 = arith.cmpi sge, %197, %274 : vector<32x128xi32>
    %276 = arith.andi %273, %275 : vector<32x128xi1>
    %cst_47 = arith.constant 0.000000e+00 : f32
    %277 = vector.broadcast %cst_47 : f32 to vector<32x128xf32>
    %278 = arith.select %276, %271, %277 : vector<32x128xi1>, vector<32x128xf32>
    %c6 = arith.constant 6 : index
    %c0_48 = arith.constant 0 : index
    %c0_49 = arith.constant 0 : index
    %279 = vector.load %arg4[%c6, %c0_48, %c0_49] : memref<9x128x128xf32, #tpu.memory_space<vmem>>, vector<1x128x128xf32>
    %280 = vector.shape_cast %279 : vector<1x128x128xf32> to vector<128x128xf32>
    %cst_50 = arith.constant dense<0.000000e+00> : vector<32x128xf32>
    %281 = tpu.matmul %278, %280, %cst_50 {dimension_numbers = #tpu.dot_dimension_numbers<[1], [0], [0], [1], [0, 0, 1, 1], [], []>} : vector<32x128xf32>, vector<128x128xf32>, vector<32x128xf32> -> vector<32x128xf32>
    %282 = arith.addf %268, %281 : vector<32x128xf32>
    %283 = vector.extract_strided_slice %194 {offsets = [4, 0], sizes = [28, 128], strides = [1, 1]} : vector<32x128xf32> to vector<28x128xf32>
    %cst_51 = arith.constant 0.000000e+00 : f32
    %284 = vector.broadcast %cst_51 : f32 to vector<4x128xf32>
    %285 = tpu.concatenate %283, %284 in 0 : vector<28x128xf32>, vector<4x128xf32> -> vector<32x128xf32>
    %c3_i32_52 = arith.constant 3 : i32
    %286 = vector.broadcast %c3_i32_52 : i32 to vector<32x128xi32>
    %287 = arith.cmpi slt, %201, %286 : vector<32x128xi32>
    %cst_53 = arith.constant 0.000000e+00 : f32
    %288 = vector.broadcast %cst_53 : f32 to vector<32x128xf32>
    %289 = arith.select %287, %285, %288 : vector<32x128xi1>, vector<32x128xf32>
    %c7 = arith.constant 7 : index
    %c0_54 = arith.constant 0 : index
    %c0_55 = arith.constant 0 : index
    %290 = vector.load %arg4[%c7, %c0_54, %c0_55] : memref<9x128x128xf32, #tpu.memory_space<vmem>>, vector<1x128x128xf32>
    %291 = vector.shape_cast %290 : vector<1x128x128xf32> to vector<128x128xf32>
    %cst_56 = arith.constant dense<0.000000e+00> : vector<32x128xf32>
    %292 = tpu.matmul %289, %291, %cst_56 {dimension_numbers = #tpu.dot_dimension_numbers<[1], [0], [0], [1], [0, 0, 1, 1], [], []>} : vector<32x128xf32>, vector<128x128xf32>, vector<32x128xf32> -> vector<32x128xf32>
    %293 = arith.addf %282, %292 : vector<32x128xf32>
    %294 = vector.extract_strided_slice %194 {offsets = [5, 0], sizes = [27, 128], strides = [1, 1]} : vector<32x128xf32> to vector<27x128xf32>
    %cst_57 = arith.constant 0.000000e+00 : f32
    %295 = vector.broadcast %cst_57 : f32 to vector<5x128xf32>
    %296 = tpu.concatenate %294, %295 in 0 : vector<27x128xf32>, vector<5x128xf32> -> vector<32x128xf32>
    %c3_i32_58 = arith.constant 3 : i32
    %297 = vector.broadcast %c3_i32_58 : i32 to vector<32x128xi32>
    %298 = arith.cmpi slt, %201, %297 : vector<32x128xi32>
    %c3_i32_59 = arith.constant 3 : i32
    %299 = vector.broadcast %c3_i32_59 : i32 to vector<32x128xi32>
    %300 = arith.cmpi slt, %197, %299 : vector<32x128xi32>
    %301 = arith.andi %298, %300 : vector<32x128xi1>
    %cst_60 = arith.constant 0.000000e+00 : f32
    %302 = vector.broadcast %cst_60 : f32 to vector<32x128xf32>
    %303 = arith.select %301, %296, %302 : vector<32x128xi1>, vector<32x128xf32>
    %c8 = arith.constant 8 : index
    %c0_61 = arith.constant 0 : index
    %c0_62 = arith.constant 0 : index
    %304 = vector.load %arg4[%c8, %c0_61, %c0_62] : memref<9x128x128xf32, #tpu.memory_space<vmem>>, vector<1x128x128xf32>
    %305 = vector.shape_cast %304 : vector<1x128x128xf32> to vector<128x128xf32>
    %cst_63 = arith.constant dense<0.000000e+00> : vector<32x128xf32>
    %306 = tpu.matmul %303, %305, %cst_63 {dimension_numbers = #tpu.dot_dimension_numbers<[1], [0], [0], [1], [0, 0, 1, 1], [], []>} : vector<32x128xf32>, vector<128x128xf32>, vector<32x128xf32> -> vector<32x128xf32>
    %307 = arith.addf %293, %306 : vector<32x128xf32>
    %308 = vector.broadcast %202 : vector<1x128xf32> to vector<32x128xf32>
    %309 = arith.addf %307, %308 : vector<32x128xf32>
    %cst_64 = arith.constant 0.000000e+00 : f32
    %310 = vector.broadcast %cst_64 : f32 to vector<32x128xf32>
    %cst_65 = arith.constant 0.000000e+00 : f32
    %311 = vector.broadcast %cst_65 : f32 to vector<5x128xf32>
    %312 = vector.extract_strided_slice %309 {offsets = [0, 0], sizes = [27, 128], strides = [1, 1]} : vector<32x128xf32> to vector<27x128xf32>
    %313 = tpu.concatenate %311, %312 in 0 : vector<5x128xf32>, vector<27x128xf32> -> vector<32x128xf32>
    %c1_i32_66 = arith.constant 1 : i32
    %314 = vector.broadcast %c1_i32_66 : i32 to vector<32x128xi32>
    %315 = arith.cmpi sge, %201, %314 : vector<32x128xi32>
    %c1_i32_67 = arith.constant 1 : i32
    %316 = vector.broadcast %c1_i32_67 : i32 to vector<32x128xi32>
    %317 = arith.cmpi sge, %197, %316 : vector<32x128xi32>
    %318 = arith.andi %315, %317 : vector<32x128xi1>
    %cst_68 = arith.constant 0.000000e+00 : f32
    %319 = vector.broadcast %cst_68 : f32 to vector<32x128xf32>
    %320 = arith.select %318, %313, %319 : vector<32x128xi1>, vector<32x128xf32>
    %c0_69 = arith.constant 0 : index
    %c0_70 = arith.constant 0 : index
    %c0_71 = arith.constant 0 : index
    %321 = vector.load %arg6[%c0_69, %c0_70, %c0_71] : memref<9x128x128xf32, #tpu.memory_space<vmem>>, vector<1x128x128xf32>
    %322 = vector.shape_cast %321 : vector<1x128x128xf32> to vector<128x128xf32>
    %cst_72 = arith.constant dense<0.000000e+00> : vector<32x128xf32>
    %323 = tpu.matmul %320, %322, %cst_72 {dimension_numbers = #tpu.dot_dimension_numbers<[1], [0], [0], [1], [0, 0, 1, 1], [], []>} : vector<32x128xf32>, vector<128x128xf32>, vector<32x128xf32> -> vector<32x128xf32>
    %324 = arith.addf %310, %323 : vector<32x128xf32>
    %cst_73 = arith.constant 0.000000e+00 : f32
    %325 = vector.broadcast %cst_73 : f32 to vector<4x128xf32>
    %326 = vector.extract_strided_slice %309 {offsets = [0, 0], sizes = [28, 128], strides = [1, 1]} : vector<32x128xf32> to vector<28x128xf32>
    %327 = tpu.concatenate %325, %326 in 0 : vector<4x128xf32>, vector<28x128xf32> -> vector<32x128xf32>
    %c1_i32_74 = arith.constant 1 : i32
    %328 = vector.broadcast %c1_i32_74 : i32 to vector<32x128xi32>
    %329 = arith.cmpi sge, %201, %328 : vector<32x128xi32>
    %cst_75 = arith.constant 0.000000e+00 : f32
    %330 = vector.broadcast %cst_75 : f32 to vector<32x128xf32>
    %331 = arith.select %329, %327, %330 : vector<32x128xi1>, vector<32x128xf32>
    %c1_76 = arith.constant 1 : index
    %c0_77 = arith.constant 0 : index
    %c0_78 = arith.constant 0 : index
    %332 = vector.load %arg6[%c1_76, %c0_77, %c0_78] : memref<9x128x128xf32, #tpu.memory_space<vmem>>, vector<1x128x128xf32>
    %333 = vector.shape_cast %332 : vector<1x128x128xf32> to vector<128x128xf32>
    %cst_79 = arith.constant dense<0.000000e+00> : vector<32x128xf32>
    %334 = tpu.matmul %331, %333, %cst_79 {dimension_numbers = #tpu.dot_dimension_numbers<[1], [0], [0], [1], [0, 0, 1, 1], [], []>} : vector<32x128xf32>, vector<128x128xf32>, vector<32x128xf32> -> vector<32x128xf32>
    %335 = arith.addf %324, %334 : vector<32x128xf32>
    %cst_80 = arith.constant 0.000000e+00 : f32
    %336 = vector.broadcast %cst_80 : f32 to vector<3x128xf32>
    %337 = vector.extract_strided_slice %309 {offsets = [0, 0], sizes = [29, 128], strides = [1, 1]} : vector<32x128xf32> to vector<29x128xf32>
    %338 = tpu.concatenate %336, %337 in 0 : vector<3x128xf32>, vector<29x128xf32> -> vector<32x128xf32>
    %c1_i32_81 = arith.constant 1 : i32
    %339 = vector.broadcast %c1_i32_81 : i32 to vector<32x128xi32>
    %340 = arith.cmpi sge, %201, %339 : vector<32x128xi32>
    %c3_i32_82 = arith.constant 3 : i32
    %341 = vector.broadcast %c3_i32_82 : i32 to vector<32x128xi32>
    %342 = arith.cmpi slt, %197, %341 : vector<32x128xi32>
    %343 = arith.andi %340, %342 : vector<32x128xi1>
    %cst_83 = arith.constant 0.000000e+00 : f32
    %344 = vector.broadcast %cst_83 : f32 to vector<32x128xf32>
    %345 = arith.select %343, %338, %344 : vector<32x128xi1>, vector<32x128xf32>
    %c2_84 = arith.constant 2 : index
    %c0_85 = arith.constant 0 : index
    %c0_86 = arith.constant 0 : index
    %346 = vector.load %arg6[%c2_84, %c0_85, %c0_86] : memref<9x128x128xf32, #tpu.memory_space<vmem>>, vector<1x128x128xf32>
    %347 = vector.shape_cast %346 : vector<1x128x128xf32> to vector<128x128xf32>
    %cst_87 = arith.constant dense<0.000000e+00> : vector<32x128xf32>
    %348 = tpu.matmul %345, %347, %cst_87 {dimension_numbers = #tpu.dot_dimension_numbers<[1], [0], [0], [1], [0, 0, 1, 1], [], []>} : vector<32x128xf32>, vector<128x128xf32>, vector<32x128xf32> -> vector<32x128xf32>
    %349 = arith.addf %335, %348 : vector<32x128xf32>
    %cst_88 = arith.constant 0.000000e+00 : f32
    %350 = vector.broadcast %cst_88 : f32 to vector<1x128xf32>
    %351 = vector.extract_strided_slice %309 {offsets = [0, 0], sizes = [31, 128], strides = [1, 1]} : vector<32x128xf32> to vector<31x128xf32>
    %352 = tpu.concatenate %350, %351 in 0 : vector<1x128xf32>, vector<31x128xf32> -> vector<32x128xf32>
    %c1_i32_89 = arith.constant 1 : i32
    %353 = vector.broadcast %c1_i32_89 : i32 to vector<32x128xi32>
    %354 = arith.cmpi sge, %197, %353 : vector<32x128xi32>
    %cst_90 = arith.constant 0.000000e+00 : f32
    %355 = vector.broadcast %cst_90 : f32 to vector<32x128xf32>
    %356 = arith.select %354, %352, %355 : vector<32x128xi1>, vector<32x128xf32>
    %c3_91 = arith.constant 3 : index
    %c0_92 = arith.constant 0 : index
    %c0_93 = arith.constant 0 : index
    %357 = vector.load %arg6[%c3_91, %c0_92, %c0_93] : memref<9x128x128xf32, #tpu.memory_space<vmem>>, vector<1x128x128xf32>
    %358 = vector.shape_cast %357 : vector<1x128x128xf32> to vector<128x128xf32>
    %cst_94 = arith.constant dense<0.000000e+00> : vector<32x128xf32>
    %359 = tpu.matmul %356, %358, %cst_94 {dimension_numbers = #tpu.dot_dimension_numbers<[1], [0], [0], [1], [0, 0, 1, 1], [], []>} : vector<32x128xf32>, vector<128x128xf32>, vector<32x128xf32> -> vector<32x128xf32>
    %360 = arith.addf %349, %359 : vector<32x128xf32>
    %c4_95 = arith.constant 4 : index
    %c0_96 = arith.constant 0 : index
    %c0_97 = arith.constant 0 : index
    %361 = vector.load %arg6[%c4_95, %c0_96, %c0_97] : memref<9x128x128xf32, #tpu.memory_space<vmem>>, vector<1x128x128xf32>
    %362 = vector.shape_cast %361 : vector<1x128x128xf32> to vector<128x128xf32>
    %cst_98 = arith.constant dense<0.000000e+00> : vector<32x128xf32>
    %363 = tpu.matmul %309, %362, %cst_98 {dimension_numbers = #tpu.dot_dimension_numbers<[1], [0], [0], [1], [0, 0, 1, 1], [], []>} : vector<32x128xf32>, vector<128x128xf32>, vector<32x128xf32> -> vector<32x128xf32>
    %364 = arith.addf %360, %363 : vector<32x128xf32>
    %365 = vector.extract_strided_slice %309 {offsets = [1, 0], sizes = [31, 128], strides = [1, 1]} : vector<32x128xf32> to vector<31x128xf32>
    %cst_99 = arith.constant 0.000000e+00 : f32
    %366 = vector.broadcast %cst_99 : f32 to vector<1x128xf32>
    %367 = tpu.concatenate %365, %366 in 0 : vector<31x128xf32>, vector<1x128xf32> -> vector<32x128xf32>
    %c3_i32_100 = arith.constant 3 : i32
    %368 = vector.broadcast %c3_i32_100 : i32 to vector<32x128xi32>
    %369 = arith.cmpi slt, %197, %368 : vector<32x128xi32>
    %cst_101 = arith.constant 0.000000e+00 : f32
    %370 = vector.broadcast %cst_101 : f32 to vector<32x128xf32>
    %371 = arith.select %369, %367, %370 : vector<32x128xi1>, vector<32x128xf32>
    %c5_102 = arith.constant 5 : index
    %c0_103 = arith.constant 0 : index
    %c0_104 = arith.constant 0 : index
    %372 = vector.load %arg6[%c5_102, %c0_103, %c0_104] : memref<9x128x128xf32, #tpu.memory_space<vmem>>, vector<1x128x128xf32>
    %373 = vector.shape_cast %372 : vector<1x128x128xf32> to vector<128x128xf32>
    %cst_105 = arith.constant dense<0.000000e+00> : vector<32x128xf32>
    %374 = tpu.matmul %371, %373, %cst_105 {dimension_numbers = #tpu.dot_dimension_numbers<[1], [0], [0], [1], [0, 0, 1, 1], [], []>} : vector<32x128xf32>, vector<128x128xf32>, vector<32x128xf32> -> vector<32x128xf32>
    %375 = arith.addf %364, %374 : vector<32x128xf32>
    %376 = vector.extract_strided_slice %309 {offsets = [3, 0], sizes = [29, 128], strides = [1, 1]} : vector<32x128xf32> to vector<29x128xf32>
    %cst_106 = arith.constant 0.000000e+00 : f32
    %377 = vector.broadcast %cst_106 : f32 to vector<3x128xf32>
    %378 = tpu.concatenate %376, %377 in 0 : vector<29x128xf32>, vector<3x128xf32> -> vector<32x128xf32>
    %c3_i32_107 = arith.constant 3 : i32
    %379 = vector.broadcast %c3_i32_107 : i32 to vector<32x128xi32>
    %380 = arith.cmpi slt, %201, %379 : vector<32x128xi32>
    %c1_i32_108 = arith.constant 1 : i32
    %381 = vector.broadcast %c1_i32_108 : i32 to vector<32x128xi32>
    %382 = arith.cmpi sge, %197, %381 : vector<32x128xi32>
    %383 = arith.andi %380, %382 : vector<32x128xi1>
    %cst_109 = arith.constant 0.000000e+00 : f32
    %384 = vector.broadcast %cst_109 : f32 to vector<32x128xf32>
    %385 = arith.select %383, %378, %384 : vector<32x128xi1>, vector<32x128xf32>
    %c6_110 = arith.constant 6 : index
    %c0_111 = arith.constant 0 : index
    %c0_112 = arith.constant 0 : index
    %386 = vector.load %arg6[%c6_110, %c0_111, %c0_112] : memref<9x128x128xf32, #tpu.memory_space<vmem>>, vector<1x128x128xf32>
    %387 = vector.shape_cast %386 : vector<1x128x128xf32> to vector<128x128xf32>
    %cst_113 = arith.constant dense<0.000000e+00> : vector<32x128xf32>
    %388 = tpu.matmul %385, %387, %cst_113 {dimension_numbers = #tpu.dot_dimension_numbers<[1], [0], [0], [1], [0, 0, 1, 1], [], []>} : vector<32x128xf32>, vector<128x128xf32>, vector<32x128xf32> -> vector<32x128xf32>
    %389 = arith.addf %375, %388 : vector<32x128xf32>
    %390 = vector.extract_strided_slice %309 {offsets = [4, 0], sizes = [28, 128], strides = [1, 1]} : vector<32x128xf32> to vector<28x128xf32>
    %cst_114 = arith.constant 0.000000e+00 : f32
    %391 = vector.broadcast %cst_114 : f32 to vector<4x128xf32>
    %392 = tpu.concatenate %390, %391 in 0 : vector<28x128xf32>, vector<4x128xf32> -> vector<32x128xf32>
    %c3_i32_115 = arith.constant 3 : i32
    %393 = vector.broadcast %c3_i32_115 : i32 to vector<32x128xi32>
    %394 = arith.cmpi slt, %201, %393 : vector<32x128xi32>
    %cst_116 = arith.constant 0.000000e+00 : f32
    %395 = vector.broadcast %cst_116 : f32 to vector<32x128xf32>
    %396 = arith.select %394, %392, %395 : vector<32x128xi1>, vector<32x128xf32>
    %c7_117 = arith.constant 7 : index
    %c0_118 = arith.constant 0 : index
    %c0_119 = arith.constant 0 : index
    %397 = vector.load %arg6[%c7_117, %c0_118, %c0_119] : memref<9x128x128xf32, #tpu.memory_space<vmem>>, vector<1x128x128xf32>
    %398 = vector.shape_cast %397 : vector<1x128x128xf32> to vector<128x128xf32>
    %cst_120 = arith.constant dense<0.000000e+00> : vector<32x128xf32>
    %399 = tpu.matmul %396, %398, %cst_120 {dimension_numbers = #tpu.dot_dimension_numbers<[1], [0], [0], [1], [0, 0, 1, 1], [], []>} : vector<32x128xf32>, vector<128x128xf32>, vector<32x128xf32> -> vector<32x128xf32>
    %400 = arith.addf %389, %399 : vector<32x128xf32>
    %401 = vector.extract_strided_slice %309 {offsets = [5, 0], sizes = [27, 128], strides = [1, 1]} : vector<32x128xf32> to vector<27x128xf32>
    %cst_121 = arith.constant 0.000000e+00 : f32
    %402 = vector.broadcast %cst_121 : f32 to vector<5x128xf32>
    %403 = tpu.concatenate %401, %402 in 0 : vector<27x128xf32>, vector<5x128xf32> -> vector<32x128xf32>
    %c3_i32_122 = arith.constant 3 : i32
    %404 = vector.broadcast %c3_i32_122 : i32 to vector<32x128xi32>
    %405 = arith.cmpi slt, %201, %404 : vector<32x128xi32>
    %c3_i32_123 = arith.constant 3 : i32
    %406 = vector.broadcast %c3_i32_123 : i32 to vector<32x128xi32>
    %407 = arith.cmpi slt, %197, %406 : vector<32x128xi32>
    %408 = arith.andi %405, %407 : vector<32x128xi1>
    %cst_124 = arith.constant 0.000000e+00 : f32
    %409 = vector.broadcast %cst_124 : f32 to vector<32x128xf32>
    %410 = arith.select %408, %403, %409 : vector<32x128xi1>, vector<32x128xf32>
    %c8_125 = arith.constant 8 : index
    %c0_126 = arith.constant 0 : index
    %c0_127 = arith.constant 0 : index
    %411 = vector.load %arg6[%c8_125, %c0_126, %c0_127] : memref<9x128x128xf32, #tpu.memory_space<vmem>>, vector<1x128x128xf32>
    %412 = vector.shape_cast %411 : vector<1x128x128xf32> to vector<128x128xf32>
    %cst_128 = arith.constant dense<0.000000e+00> : vector<32x128xf32>
    %413 = tpu.matmul %410, %412, %cst_128 {dimension_numbers = #tpu.dot_dimension_numbers<[1], [0], [0], [1], [0, 0, 1, 1], [], []>} : vector<32x128xf32>, vector<128x128xf32>, vector<32x128xf32> -> vector<32x128xf32>
    %414 = arith.addf %400, %413 : vector<32x128xf32>
    %415 = arith.addf %414, %194 : vector<32x128xf32>
    %c0_129 = arith.constant 0 : index
    %c0_130 = arith.constant 0 : index
    %416 = vector.load %arg7[%c0_129, %c0_130] : memref<32x128xf32, #tpu.memory_space<vmem>>, vector<32x128xf32>
    tpu.vector_store %arg7[%c0_129, %c0_130], %415 {strides = array<i32>} : memref<32x128xf32, #tpu.memory_space<vmem>>, vector<32x128xf32>,
    return
  }
  func.func @transform_0(%arg0: i32) -> (i32, i32) {
    %c0_i32 = arith.constant 0 : i32
    %c0_i32_0 = arith.constant 0 : i32
    %c0_i32_1 = arith.constant 0 : i32
    return %c0_i32, %c0_i32_0 : i32, i32
  }
  func.func @transform_1(%arg0: i32) -> (i32, i32) {
    %c0_i32 = arith.constant 0 : i32
    %c0_i32_0 = arith.constant 0 : i32
    %c0_i32_1 = arith.constant 0 : i32
    return %c0_i32, %c0_i32_0 : i32, i32
  }
  func.func @transform_2(%arg0: i32) -> (i32, i32) {
    %c0_i32 = arith.constant 0 : i32
    %c0_i32_0 = arith.constant 0 : i32
    %c0_i32_1 = arith.constant 0 : i32
    return %c0_i32, %c0_i32_0 : i32, i32
  }
  func.func @transform_3(%arg0: i32) -> (i32, i32, i32) {
    %c0_i32 = arith.constant 0 : i32
    %c0_i32_0 = arith.constant 0 : i32
    %c0_i32_1 = arith.constant 0 : i32
    %c0_i32_2 = arith.constant 0 : i32
    return %c0_i32, %c0_i32_0, %c0_i32_1 : i32, i32, i32
  }
  func.func @transform_4(%arg0: i32) -> (i32, i32) {
    %c0_i32 = arith.constant 0 : i32
    %c0_i32_0 = arith.constant 0 : i32
    %c0_i32_1 = arith.constant 0 : i32
    return %c0_i32, %c0_i32_0 : i32, i32
  }
  func.func @transform_5(%arg0: i32) -> (i32, i32, i32) {
    %c0_i32 = arith.constant 0 : i32
    %c0_i32_0 = arith.constant 0 : i32
    %c0_i32_1 = arith.constant 0 : i32
    %c0_i32_2 = arith.constant 0 : i32
    return %c0_i32, %c0_i32_0, %c0_i32_1 : i32, i32, i32
  }
  func.func @transform_6(%arg0: i32) -> (i32, i32) {
    %c0_i32 = arith.constant 0 : i32
    %c0_i32_0 = arith.constant 0 : i32
    %c0_i32_1 = arith.constant 0 : i32
    return %c0_i32, %c0_i32_0 : i32, i32
  }
}

</mosaic_0001>

<llo_original>
// kernel: test_model0_forward.1
$region0: #{test_model0_forward.1}
  #allocation0 [shape = 'u32[]', space=smem, size = 0x4, offset = 0x4, fixed_abs, tag = 'smem constant byte address 0x4 - core index']
  #allocation1 [shape = 'u32[72,128]{1,0:T(1,128)}', space=vmem, size = 0x9000, scoped, tag = 'internal scratch']
  %s0 = inlined_call_operand.vmem [shape: f32[128,256], index: 0, kind: input, shape index: {}]
  %s1 = inlined_call_operand.vmem [shape: f32[256,128], index: 1, kind: input, shape index: {}]
  %s2 = inlined_call_operand.vmem [shape: f32[1,128], index: 2, kind: input, shape index: {}]
  %s3 = inlined_call_operand.vmem [shape: f32[9,128,128], index: 3, kind: input, shape index: {}]
  %s4 = inlined_call_operand.vmem [shape: f32[1,128], index: 4, kind: input, shape index: {}]
  %s5 = inlined_call_operand.vmem [shape: f32[9,128,128], index: 5, kind: input, shape index: {}]
  %s6 = inlined_call_operand.hbm [shape: f32[32,128], index: 6, kind: output, shape index: {}]
  %s7 = sld [smem:[#allocation0]]
  $region34: #{test_model0_forward.1} parent=0
    _
  %s9 = ssub.s32 1, %s7
  %s10 = scalar_select 0, %s9, %s7
  $region1: #{test_model0_forward.1} parent=0
    #allocation2 [shape = 'u8[16384]{0}', space=vmem, size = 0x4000, scoped, tag = 'output window, operand 0, single buffered']
    #allocation3 [shape = 's32[1]{0}', space=sflag, size = 0x4, scoped, tag = 'scoped memory for test_model0_forward.1']
    %11 = vsyncpa [#allocation3], 0
    // Predicated region
    $region2: #{test_model0_forward.1} parent=1 // pred_check
      _
    $region3: #{test_model0_forward.1} parent=1 // pred_check_branch
      %13 = sbr.rel (0) target = $region5
    $region4: #{test_model0_forward.1} parent=1 // pred_region
      _
    $region5: #{test_model0_forward.1} parent=1 // pred_fallthru
      _
    // Predicated region
    $region6: #{test_model0_forward.1} parent=1 // pred_check
      _
    $region7: #{test_model0_forward.1} parent=1 // pred_check_branch
      %15 = sbr.rel (0) target = $region9
    $region8: #{test_model0_forward.1} parent=1 // pred_region
      _
    $region9: #{test_model0_forward.1} parent=1 // pred_fallthru
      _
    // Predicated region
    $region10: #{test_model0_forward.1} parent=1 // pred_check
      _
    $region11: #{test_model0_forward.1} parent=1 // pred_check_branch
      %17 = sbr.rel (0) target = $region13
    $region12: #{test_model0_forward.1} parent=1 // pred_region
      _
    $region13: #{test_model0_forward.1} parent=1 // pred_fallthru
      _
    // Predicated region
    $region14: #{test_model0_forward.1} parent=1 // pred_check
      _
    $region15: #{test_model0_forward.1} parent=1 // pred_check_branch
      %19 = sbr.rel (0) target = $region17
    $region16: #{test_model0_forward.1} parent=1 // pred_region
      _
    $region17: #{test_model0_forward.1} parent=1 // pred_fallthru
      _
    // Predicated region
    $region18: #{test_model0_forward.1} parent=1 // pred_check
      _
    $region19: #{test_model0_forward.1} parent=1 // pred_check_branch
      %21 = sbr.rel (0) target = $region21
    $region20: #{test_model0_forward.1} parent=1 // pred_region
      _
    $region21: #{test_model0_forward.1} parent=1 // pred_fallthru
      _
    // Predicated region
    $region22: #{test_model0_forward.1} parent=1 // pred_check
      _
    $region23: #{test_model0_forward.1} parent=1 // pred_check_branch
      %23 = sbr.rel (0) target = $region25
    $region24: #{test_model0_forward.1} parent=1 // pred_region
      _
    $region25: #{test_model0_forward.1} parent=1 // pred_fallthru
      _
    %v24 = vld [vmem:[%s0] sm:$0xff]
    %v25 = vld [vmem:[%s0 + $0x8] sm:$0xff]
    %v26 = vld [vmem:[%s0 + $0x10] sm:$0xff]
    %v27 = vld [vmem:[%s0 + $0x18] sm:$0xff]
    %v28 = vld [vmem:[%s0 + $0x20] sm:$0xff]
    %v29 = vld [vmem:[%s0 + $0x28] sm:$0xff]
    %v30 = vld [vmem:[%s0 + $0x30] sm:$0xff]
    %v31 = vld [vmem:[%s0 + $0x38] sm:$0xff]
    %v32 = vld [vmem:[%s0 + $0x40] sm:$0xff]
    %v33 = vld [vmem:[%s0 + $0x48] sm:$0xff]
    %v34 = vld [vmem:[%s0 + $0x50] sm:$0xff]
    %v35 = vld [vmem:[%s0 + $0x58] sm:$0xff]
    %v36 = vld [vmem:[%s0 + $0x60] sm:$0xff]
    %v37 = vld [vmem:[%s0 + $0x68] sm:$0xff]
    %v38 = vld [vmem:[%s0 + $0x70] sm:$0xff]
    %v39 = vld [vmem:[%s0 + $0x78] sm:$0xff]
    %v40 = vld [vmem:[%s0 + $0x80] sm:$0xff]
    %v41 = vld [vmem:[%s0 + $0x88] sm:$0xff]
    %v42 = vld [vmem:[%s0 + $0x90] sm:$0xff]
    %v43 = vld [vmem:[%s0 + $0x98] sm:$0xff]
    %v44 = vld [vmem:[%s0 + $0xa0] sm:$0xff]
    %v45 = vld [vmem:[%s0 + $0xa8] sm:$0xff]
    %v46 = vld [vmem:[%s0 + $0xb0] sm:$0xff]
    %v47 = vld [vmem:[%s0 + $0xb8] sm:$0xff]
    %v48 = vld [vmem:[%s0 + $0xc0] sm:$0xff]
    %v49 = vld [vmem:[%s0 + $0xc8] sm:$0xff]
    %v50 = vld [vmem:[%s0 + $0xd0] sm:$0xff]
    %v51 = vld [vmem:[%s0 + $0xd8] sm:$0xff]
    %v52 = vld [vmem:[%s0 + $0xe0] sm:$0xff]
    %v53 = vld [vmem:[%s0 + $0xe8] sm:$0xff]
    %v54 = vld [vmem:[%s0 + $0xf0] sm:$0xff]
    %v55 = vld [vmem:[%s0 + $0xf8] sm:$0xff]
    %v56 = vld [vmem:[%s1] sm:$0xff]
    %v57 = vld [vmem:[%s1 + $0x8] sm:$0xff]
    %v58 = vld [vmem:[%s1 + $0x10] sm:$0xff]
    %v59 = vld [vmem:[%s1 + $0x18] sm:$0xff]
    %v60 = vld [vmem:[%s1 + $0x20] sm:$0xff]
    %v61 = vld [vmem:[%s1 + $0x28] sm:$0xff]
    %v62 = vld [vmem:[%s1 + $0x30] sm:$0xff]
    %v63 = vld [vmem:[%s1 + $0x38] sm:$0xff]
    %v64 = vld [vmem:[%s1 + $0x40] sm:$0xff]
    %v65 = vld [vmem:[%s1 + $0x48] sm:$0xff]
    %v66 = vld [vmem:[%s1 + $0x50] sm:$0xff]
    %v67 = vld [vmem:[%s1 + $0x58] sm:$0xff]
    %v68 = vld [vmem:[%s1 + $0x60] sm:$0xff]
    %v69 = vld [vmem:[%s1 + $0x68] sm:$0xff]
    %v70 = vld [vmem:[%s1 + $0x70] sm:$0xff]
    %v71 = vld [vmem:[%s1 + $0x78] sm:$0xff]
    %v72 = vld [vmem:[%s1 + $0x80] sm:$0xff]
    %v73 = vld [vmem:[%s1 + $0x88] sm:$0xff]
    %v74 = vld [vmem:[%s1 + $0x90] sm:$0xff]
    %v75 = vld [vmem:[%s1 + $0x98] sm:$0xff]
    %v76 = vld [vmem:[%s1 + $0xa0] sm:$0xff]
    %v77 = vld [vmem:[%s1 + $0xa8] sm:$0xff]
    %v78 = vld [vmem:[%s1 + $0xb0] sm:$0xff]
    %v79 = vld [vmem:[%s1 + $0xb8] sm:$0xff]
    %v80 = vld [vmem:[%s1 + $0xc0] sm:$0xff]
    %v81 = vld [vmem:[%s1 + $0xc8] sm:$0xff]
    %v82 = vld [vmem:[%s1 + $0xd0] sm:$0xff]
    %v83 = vld [vmem:[%s1 + $0xd8] sm:$0xff]
    %v84 = vld [vmem:[%s1 + $0xe0] sm:$0xff]
    %v85 = vld [vmem:[%s1 + $0xe8] sm:$0xff]
    %v86 = vld [vmem:[%s1 + $0xf0] sm:$0xff]
    %v87 = vld [vmem:[%s1 + $0xf8] sm:$0xff]
    %v88 = vld [vmem:[%s2] sm:$0x1]
    %v90 = vperm.slane %v88, 0
    %92 = vmatpush.msra.mxu0 %v71
    %93 = vmatpush.msra.mxu0 %v70
    %94 = vmatpush.msra.mxu0 %v69
    %95 = vmatpush.msra.mxu0 %v68
    %96 = vmatpush.msra.mxu0 %v67
    %97 = vmatpush.msra.mxu0 %v66
    %98 = vmatpush.msra.mxu0 %v65
    %99 = vmatpush.msra.mxu0 %v64
    %100 = vmatpush.msra.mxu0 %v63
    %101 = vmatpush.msra.mxu0 %v62
    %102 = vmatpush.msra.mxu0 %v61
    %103 = vmatpush.msra.mxu0 %v60
    %104 = vmatpush.msra.mxu0 %v59
    %105 = vmatpush.msra.mxu0 %v58
    %106 = vmatpush.msra.mxu0 %v57
    %107 = vmatpush.msra.mxu0 %v56
    %108 = vmatmul.f32.gmra.mxu0 %v24
    %v109 = vpop.f32.mrf.mxu0
    %v110 = vadd.f32 %v90, %v109
    %111 = vmatmul.f32.gmra.mxu0 %v26
    %v112 = vpop.f32.mrf.mxu0
    %v113 = vadd.f32 %v90, %v112
    %114 = vmatmul.f32.gmra.mxu0 %v28
    %v115 = vpop.f32.mrf.mxu0
    %v116 = vadd.f32 %v90, %v115
    %117 = vmatmul.f32.gmra.mxu0 %v30
    %v118 = vpop.f32.mrf.mxu0
    %v119 = vadd.f32 %v90, %v118
    %120 = vmatmul.f32.gmra.mxu0 %v32
    %v121 = vpop.f32.mrf.mxu0
    %v122 = vadd.f32 %v90, %v121
    %123 = vmatmul.f32.gmra.mxu0 %v34
    %v124 = vpop.f32.mrf.mxu0
    %v125 = vadd.f32 %v90, %v124
    %126 = vmatmul.f32.gmra.mxu0 %v36
    %v127 = vpop.f32.mrf.mxu0
    %v128 = vadd.f32 %v90, %v127
    %129 = vmatmul.f32.gmra.mxu0 %v38
    %v130 = vpop.f32.mrf.mxu0
    %v131 = vadd.f32 %v90, %v130
    %132 = vmatmul.f32.gmra.mxu0 %v40
    %v133 = vpop.f32.mrf.mxu0
    %v134 = vadd.f32 %v90, %v133
    %135 = vmatmul.f32.gmra.mxu0 %v42
    %v136 = vpop.f32.mrf.mxu0
    %v137 = vadd.f32 %v90, %v136
    %138 = vmatmul.f32.gmra.mxu0 %v44
    %v139 = vpop.f32.mrf.mxu0
    %v140 = vadd.f32 %v90, %v139
    %141 = vmatmul.f32.gmra.mxu0 %v46
    %v142 = vpop.f32.mrf.mxu0
    %v143 = vadd.f32 %v90, %v142
    %144 = vmatmul.f32.gmra.mxu0 %v48
    %v145 = vpop.f32.mrf.mxu0
    %v146 = vadd.f32 %v90, %v145
    %147 = vmatmul.f32.gmra.mxu0 %v50
    %v148 = vpop.f32.mrf.mxu0
    %v149 = vadd.f32 %v90, %v148
    %150 = vmatmul.f32.gmra.mxu0 %v52
    %v151 = vpop.f32.mrf.mxu0
    %v152 = vadd.f32 %v90, %v151
    %153 = vmatmul.f32.gmra.mxu0 %v54
    %v154 = vpop.f32.mrf.mxu0
    %v155 = vadd.f32 %v90, %v154
    %156 = vdwg.mxu0
    %157 = vmatpush.msra.mxu0 %v87
    %158 = vmatpush.msra.mxu0 %v86
    %159 = vmatpush.msra.mxu0 %v85
    %160 = vmatpush.msra.mxu0 %v84
    %161 = vmatpush.msra.mxu0 %v83
    %162 = vmatpush.msra.mxu0 %v82
    %163 = vmatpush.msra.mxu0 %v81
    %164 = vmatpush.msra.mxu0 %v80
    %165 = vmatpush.msra.mxu0 %v79
    %166 = vmatpush.msra.mxu0 %v78
    %167 = vmatpush.msra.mxu0 %v77
    %168 = vmatpush.msra.mxu0 %v76
    %169 = vmatpush.msra.mxu0 %v75
    %170 = vmatpush.msra.mxu0 %v74
    %171 = vmatpush.msra.mxu0 %v73
    %172 = vmatpush.msra.mxu0 %v72
    %173 = vmatmul.f32.gmra.mxu0 %v25
    %v174 = vpop.f32.mrf.mxu0
    %v175 = vadd.f32 %v110, %v174
    %176 = vmatmul.f32.gmra.mxu0 %v27
    %v177 = vpop.f32.mrf.mxu0
    %v178 = vadd.f32 %v113, %v177
    %179 = vmatmul.f32.gmra.mxu0 %v29
    %v180 = vpop.f32.mrf.mxu0
    %v181 = vadd.f32 %v116, %v180
    %182 = vmatmul.f32.gmra.mxu0 %v31
    %v183 = vpop.f32.mrf.mxu0
    %v184 = vadd.f32 %v119, %v183
    %185 = vmatmul.f32.gmra.mxu0 %v33
    %v186 = vpop.f32.mrf.mxu0
    %v187 = vadd.f32 %v122, %v186
    %188 = vmatmul.f32.gmra.mxu0 %v35
    %v189 = vpop.f32.mrf.mxu0
    %v190 = vadd.f32 %v125, %v189
    %191 = vmatmul.f32.gmra.mxu0 %v37
    %v192 = vpop.f32.mrf.mxu0
    %v193 = vadd.f32 %v128, %v192
    %194 = vmatmul.f32.gmra.mxu0 %v39
    %v195 = vpop.f32.mrf.mxu0
    %v196 = vadd.f32 %v131, %v195
    %197 = vmatmul.f32.gmra.mxu0 %v41
    %v198 = vpop.f32.mrf.mxu0
    %v199 = vadd.f32 %v134, %v198
    %200 = vmatmul.f32.gmra.mxu0 %v43
    %v201 = vpop.f32.mrf.mxu0
    %v202 = vadd.f32 %v137, %v201
    %203 = vmatmul.f32.gmra.mxu0 %v45
    %v204 = vpop.f32.mrf.mxu0
    %v205 = vadd.f32 %v140, %v204
    %206 = vmatmul.f32.gmra.mxu0 %v47
    %v207 = vpop.f32.mrf.mxu0
    %v208 = vadd.f32 %v143, %v207
    %209 = vmatmul.f32.gmra.mxu0 %v49
    %v210 = vpop.f32.mrf.mxu0
    %v211 = vadd.f32 %v146, %v210
    %212 = vmatmul.f32.gmra.mxu0 %v51
    %v213 = vpop.f32.mrf.mxu0
    %v214 = vadd.f32 %v149, %v213
    %215 = vmatmul.f32.gmra.mxu0 %v53
    %v216 = vpop.f32.mrf.mxu0
    %v217 = vadd.f32 %v152, %v216
    %218 = vmatmul.f32.gmra.mxu0 %v55
    %v219 = vpop.f32.mrf.mxu0
    %v220 = vadd.f32 %v155, %v219
    %221 = vdwg.mxu0
    %v222 = vmax.f32 %v175, %v178
    %v224 = vrot.slane %v222, 1
    %v226 = vmax.f32 %v222, %v224
    %v227 = vrot.slane %v222, 2
    %v229 = vmax.f32 %v226, %v227
    %v231 = vrot.slane %v229, 1
    %v233 = vrot.slane %v229, 2
    %vm235 = vcmask 1040384
    %v236 = vsel %vm235, %v226, %v229
    %vm237 = vcmask 1041408
    %v238 = vsel %vm237, %v236, %v231
    %vm239 = vcmask 1042432
    %v240 = vsel %vm239, %v238, %v233
    %v241 = vmax.f32 %v178, %v181
    %v242 = vmax.f32 %v241, %v184
    %v244 = vrot.slane %v242, 1
    %v246 = vmax.f32 %v242, %v244
    %v247 = vrot.slane %v242, 2
    %v249 = vmax.f32 %v246, %v247
    %v251 = vrot.slane %v249, 1
    %v253 = vrot.slane %v249, 2
    %v255 = vsel %vm235, %v246, %v249
    %v256 = vsel %vm237, %v255, %v251
    %v257 = vsel %vm239, %v256, %v253
    %v258 = vmax.f32 %v184, %v187
    %v259 = vmax.f32 %v258, %v190
    %v261 = vrot.slane %v259, 1
    %v263 = vmax.f32 %v259, %v261
    %v264 = vrot.slane %v259, 2
    %v266 = vmax.f32 %v263, %v264
    %v268 = vrot.slane %v266, 1
    %v270 = vrot.slane %v266, 2
    %v272 = vsel %vm235, %v263, %v266
    %v273 = vsel %vm237, %v272, %v268
    %v274 = vsel %vm239, %v273, %v270
    %v275 = vmax.f32 %v190, %v193
    %v276 = vmax.f32 %v275, %v196
    %v278 = vrot.slane %v276, 1
    %v280 = vmax.f32 %v276, %v278
    %v281 = vrot.slane %v276, 2
    %v283 = vmax.f32 %v280, %v281
    %v285 = vrot.slane %v283, 1
    %v287 = vrot.slane %v283, 2
    %v289 = vsel %vm235, %v280, %v283
    %v290 = vsel %vm237, %v289, %v285
    %v291 = vsel %vm239, %v290, %v287
    %v292 = vmax.f32 %v199, %v202
    %v294 = vrot.slane %v292, 1
    %v296 = vmax.f32 %v292, %v294
    %v297 = vrot.slane %v292, 2
    %v299 = vmax.f32 %v296, %v297
    %v301 = vrot.slane %v299, 1
    %v303 = vrot.slane %v299, 2
    %v305 = vsel %vm235, %v296, %v299
    %v306 = vsel %vm237, %v305, %v301
    %v307 = vsel %vm239, %v306, %v303
    %v308 = vmax.f32 %v202, %v205
    %v309 = vmax.f32 %v308, %v208
    %v311 = vrot.slane %v309, 1
    %v313 = vmax.f32 %v309, %v311
    %v314 = vrot.slane %v309, 2
    %v316 = vmax.f32 %v313, %v314
    %v318 = vrot.slane %v316, 1
    %v320 = vrot.slane %v316, 2
    %v322 = vsel %vm235, %v313, %v316
    %v323 = vsel %vm237, %v322, %v318
    %v324 = vsel %vm239, %v323, %v320
    %v325 = vmax.f32 %v208, %v211
    %v326 = vmax.f32 %v325, %v214
    %v328 = vrot.slane %v326, 1
    %v330 = vmax.f32 %v326, %v328
    %v331 = vrot.slane %v326, 2
    %v333 = vmax.f32 %v330, %v331
    %v335 = vrot.slane %v333, 1
    %v337 = vrot.slane %v333, 2
    %v339 = vsel %vm235, %v330, %v333
    %v340 = vsel %vm237, %v339, %v335
    %v341 = vsel %vm239, %v340, %v337
    %v342 = vmax.f32 %v214, %v217
    %v343 = vmax.f32 %v342, %v220
    %v345 = vrot.slane %v343, 1
    %v347 = vmax.f32 %v343, %v345
    %v348 = vrot.slane %v343, 2
    %v350 = vmax.f32 %v347, %v348
    %v352 = vrot.slane %v350, 1
    %v354 = vrot.slane %v350, 2
    %v356 = vsel %vm235, %v347, %v350
    %v357 = vsel %vm237, %v356, %v352
    %v358 = vsel %vm239, %v357, %v354
    %v360 = vrot.slane %v257, 4
    %v363 = vrot.slane %v291, 4
    %v366 = vrot.slane %v324, 4
    %v369 = vrot.slane %v358, 4
    %vm371 = vcmask 1043456
    %v372 = vsel %vm371, %v240, %v360
    %v373 = vsel %vm371, %v274, %v363
    %v374 = vsel %vm371, %v307, %v366
    %v375 = vsel %vm371, %v341, %v369
    %v376 = vlaneseq
    %v377 = vshrl.u32 %v376, 7
    %v378 = vadd.s32 %v377, 8
    %v379 = vadd.s32 %v377, 16
    %v380 = vadd.s32 %v377, 24
    %v381 = vand.u32 %v377, 3
    %v382 = vand.u32 %v378, 3
    %v383 = vand.u32 %v379, 3
    %v384 = vand.u32 %v380, 3
    %v385 = vshra.s32 %v377, 2
    %v386 = vshra.s32 %v378, 2
    %v387 = vshra.s32 %v379, 2
    %v388 = vshra.s32 %v380, 2
    %v389 = vand.u32 %v385, 3
    %v390 = vand.u32 %v386, 3
    %v391 = vand.u32 %v387, 3
    %v392 = vand.u32 %v388, 3
    %v393 = vld [vmem:[%s4] sm:$0x1]
    %vm398 = vcmask 1044480
    %v399 = vrot.slane %v372, 3
    %v400 = vrot.slane %v373, 3
    %v401 = vsel %vm398, %v399, %v400
    %v402 = vrot.slane %v374, 3
    %v403 = vsel %vm398, %v400, %v402
    %v404 = vrot.slane %v375, 3
    %v405 = vsel %vm398, %v402, %v404
    %v410 = vsel %vm398, 0.0, %v399
    %vm411 = vcmp.ge.s32.totalorder %v389, 1
    %vm412 = vcmp.ge.s32.totalorder %v390, 1
    %vm413 = vcmp.ge.s32.totalorder %v391, 1
    %vm414 = vcmp.ge.s32.totalorder %v392, 1
    %vm415 = vcmp.ge.s32.totalorder %v381, 1
    %vm416 = vcmp.ge.s32.totalorder %v382, 1
    %vm417 = vcmp.ge.s32.totalorder %v383, 1
    %vm418 = vcmp.ge.s32.totalorder %v384, 1
    %vm419 = vmand %vm411, %vm415
    %vm420 = vmand %vm412, %vm416
    %vm421 = vmand %vm413, %vm417
    %vm422 = vmand %vm414, %vm418
    %v423 = vsel %vm419, %v410, 0.0
    %v424 = vsel %vm420, %v401, 0.0
    %v425 = vsel %vm421, %v403, 0.0
    %v426 = vsel %vm422, %v405, 0.0
    %v427 = vld [vmem:[%s3] sm:$0xff]
    %v428 = vld [vmem:[%s3 + $0x8] sm:$0xff]
    %v429 = vld [vmem:[%s3 + $0x10] sm:$0xff]
    %v430 = vld [vmem:[%s3 + $0x18] sm:$0xff]
    %v431 = vld [vmem:[%s3 + $0x20] sm:$0xff]
    %v432 = vld [vmem:[%s3 + $0x28] sm:$0xff]
    %v433 = vld [vmem:[%s3 + $0x30] sm:$0xff]
    %v434 = vld [vmem:[%s3 + $0x38] sm:$0xff]
    %v435 = vld [vmem:[%s3 + $0x40] sm:$0xff]
    %v436 = vld [vmem:[%s3 + $0x48] sm:$0xff]
    %v437 = vld [vmem:[%s3 + $0x50] sm:$0xff]
    %v438 = vld [vmem:[%s3 + $0x58] sm:$0xff]
    %v439 = vld [vmem:[%s3 + $0x60] sm:$0xff]
    %v440 = vld [vmem:[%s3 + $0x68] sm:$0xff]
    %v441 = vld [vmem:[%s3 + $0x70] sm:$0xff]
    %v442 = vld [vmem:[%s3 + $0x78] sm:$0xff]
    %v443 = vrot.slane %v372, 4
    %v444 = vrot.slane %v373, 4
    %v445 = vsel %vm371, %v443, %v444
    %v446 = vrot.slane %v374, 4
    %v447 = vsel %vm371, %v444, %v446
    %v448 = vrot.slane %v375, 4
    %v449 = vsel %vm371, %v446, %v448
    %v454 = vsel %vm371, 0.0, %v443
    %v455 = vsel %vm411, %v454, 0.0
    %v456 = vsel %vm412, %v445, 0.0
    %v457 = vsel %vm413, %v447, 0.0
    %v458 = vsel %vm414, %v449, 0.0
    %s459 = scalar_lea.vmem %s3, 128
    %v460 = vld [vmem:[%s459] sm:$0xff]
    %v461 = vld [vmem:[%s459 + $0x8] sm:$0xff]
    %v462 = vld [vmem:[%s459 + $0x10] sm:$0xff]
    %v463 = vld [vmem:[%s459 + $0x18] sm:$0xff]
    %v464 = vld [vmem:[%s459 + $0x20] sm:$0xff]
    %v465 = vld [vmem:[%s459 + $0x28] sm:$0xff]
    %v466 = vld [vmem:[%s459 + $0x30] sm:$0xff]
    %v467 = vld [vmem:[%s459 + $0x38] sm:$0xff]
    %v468 = vld [vmem:[%s459 + $0x40] sm:$0xff]
    %v469 = vld [vmem:[%s459 + $0x48] sm:$0xff]
    %v470 = vld [vmem:[%s459 + $0x50] sm:$0xff]
    %v471 = vld [vmem:[%s459 + $0x58] sm:$0xff]
    %v472 = vld [vmem:[%s459 + $0x60] sm:$0xff]
    %v473 = vld [vmem:[%s459 + $0x68] sm:$0xff]
    %v474 = vld [vmem:[%s459 + $0x70] sm:$0xff]
    %v475 = vld [vmem:[%s459 + $0x78] sm:$0xff]
    %476 = vmatpush.msra.mxu0 %v475
    %477 = vmatpush.msra.mxu0 %v474
    %478 = vmatpush.msra.mxu0 %v473
    %479 = vmatpush.msra.mxu0 %v472
    %480 = vmatpush.msra.mxu0 %v471
    %481 = vmatpush.msra.mxu0 %v470
    %482 = vmatpush.msra.mxu0 %v469
    %483 = vmatpush.msra.mxu0 %v468
    %484 = vmatpush.msra.mxu0 %v467
    %485 = vmatpush.msra.mxu0 %v466
    %486 = vmatpush.msra.mxu0 %v465
    %487 = vmatpush.msra.mxu0 %v464
    %488 = vmatpush.msra.mxu0 %v463
    %489 = vmatpush.msra.mxu0 %v462
    %490 = vmatpush.msra.mxu0 %v461
    %491 = vmatpush.msra.mxu0 %v460
    %492 = vmatmul.f32.gmra.mxu0 %v455
    %v493 = vpop.f32.mrf.mxu0
    %v494 = vadd.f32 0.0, %v493
    %495 = vmatmul.f32.gmra.mxu0 %v456
    %v496 = vpop.f32.mrf.mxu0
    %v497 = vadd.f32 0.0, %v496
    %498 = vmatmul.f32.gmra.mxu0 %v457
    %v499 = vpop.f32.mrf.mxu0
    %v500 = vadd.f32 0.0, %v499
    %501 = vmatmul.f32.gmra.mxu0 %v458
    %v502 = vpop.f32.mrf.mxu0
    %v503 = vadd.f32 0.0, %v502
    %504 = vdwg.mxu0
    %505 = vmatpush.msra.mxu0 %v442
    %506 = vmatpush.msra.mxu0 %v441
    %507 = vmatpush.msra.mxu0 %v440
    %508 = vmatpush.msra.mxu0 %v439
    %509 = vmatpush.msra.mxu0 %v438
    %510 = vmatpush.msra.mxu0 %v437
    %511 = vmatpush.msra.mxu0 %v436
    %512 = vmatpush.msra.mxu0 %v435
    %513 = vmatpush.msra.mxu0 %v434
    %514 = vmatpush.msra.mxu0 %v433
    %515 = vmatpush.msra.mxu0 %v432
    %516 = vmatpush.msra.mxu0 %v431
    %517 = vmatpush.msra.mxu0 %v430
    %518 = vmatpush.msra.mxu0 %v429
    %519 = vmatpush.msra.mxu0 %v428
    %520 = vmatpush.msra.mxu0 %v427
    %521 = vmatmul.f32.gmra.mxu0 %v423
    %v522 = vpop.f32.mrf.mxu0
    %v523 = vadd.f32 %v494, %v522
    %524 = vmatmul.f32.gmra.mxu0 %v424
    %v525 = vpop.f32.mrf.mxu0
    %v526 = vadd.f32 %v497, %v525
    %527 = vmatmul.f32.gmra.mxu0 %v425
    %v528 = vpop.f32.mrf.mxu0
    %v529 = vadd.f32 %v500, %v528
    %530 = vmatmul.f32.gmra.mxu0 %v426
    %v531 = vpop.f32.mrf.mxu0
    %v532 = vadd.f32 %v503, %v531
    %533 = vdwg.mxu0
    %v534 = vrot.slane %v372, 5
    %v535 = vrot.slane %v373, 5
    %v536 = vsel %vm239, %v534, %v535
    %v537 = vrot.slane %v374, 5
    %v538 = vsel %vm239, %v535, %v537
    %v539 = vrot.slane %v375, 5
    %v540 = vsel %vm239, %v537, %v539
    %v545 = vsel %vm239, 0.0, %v534
    %vm546 = vcmp.lt.s32.totalorder %v381, 3
    %vm547 = vcmp.lt.s32.totalorder %v382, 3
    %vm548 = vcmp.lt.s32.totalorder %v383, 3
    %vm549 = vcmp.lt.s32.totalorder %v384, 3
    %vm550 = vmand %vm411, %vm546
    %vm551 = vmand %vm412, %vm547
    %vm552 = vmand %vm413, %vm548
    %vm553 = vmand %vm414, %vm549
    %v554 = vsel %vm550, %v545, 0.0
    %v555 = vsel %vm551, %v536, 0.0
    %v556 = vsel %vm552, %v538, 0.0
    %v557 = vsel %vm553, %v540, 0.0
    %s558 = scalar_lea.vmem %s3, 256
    %v559 = vld [vmem:[%s558] sm:$0xff]
    %v560 = vld [vmem:[%s558 + $0x8] sm:$0xff]
    %v561 = vld [vmem:[%s558 + $0x10] sm:$0xff]
    %v562 = vld [vmem:[%s558 + $0x18] sm:$0xff]
    %v563 = vld [vmem:[%s558 + $0x20] sm:$0xff]
    %v564 = vld [vmem:[%s558 + $0x28] sm:$0xff]
    %v565 = vld [vmem:[%s558 + $0x30] sm:$0xff]
    %v566 = vld [vmem:[%s558 + $0x38] sm:$0xff]
    %v567 = vld [vmem:[%s558 + $0x40] sm:$0xff]
    %v568 = vld [vmem:[%s558 + $0x48] sm:$0xff]
    %v569 = vld [vmem:[%s558 + $0x50] sm:$0xff]
    %v570 = vld [vmem:[%s558 + $0x58] sm:$0xff]
    %v571 = vld [vmem:[%s558 + $0x60] sm:$0xff]
    %v572 = vld [vmem:[%s558 + $0x68] sm:$0xff]
    %v573 = vld [vmem:[%s558 + $0x70] sm:$0xff]
    %v574 = vld [vmem:[%s558 + $0x78] sm:$0xff]
    %575 = vmatpush.msra.mxu0 %v574
    %576 = vmatpush.msra.mxu0 %v573
    %577 = vmatpush.msra.mxu0 %v572
    %578 = vmatpush.msra.mxu0 %v571
    %579 = vmatpush.msra.mxu0 %v570
    %580 = vmatpush.msra.mxu0 %v569
    %581 = vmatpush.msra.mxu0 %v568
    %582 = vmatpush.msra.mxu0 %v567
    %583 = vmatpush.msra.mxu0 %v566
    %584 = vmatpush.msra.mxu0 %v565
    %585 = vmatpush.msra.mxu0 %v564
    %586 = vmatpush.msra.mxu0 %v563
    %587 = vmatpush.msra.mxu0 %v562
    %588 = vmatpush.msra.mxu0 %v561
    %589 = vmatpush.msra.mxu0 %v560
    %590 = vmatpush.msra.mxu0 %v559
    %591 = vmatmul.f32.gmra.mxu0 %v554
    %v592 = vpop.f32.mrf.mxu0
    %v593 = vadd.f32 0.0, %v592
    %594 = vmatmul.f32.gmra.mxu0 %v555
    %v595 = vpop.f32.mrf.mxu0
    %v596 = vadd.f32 0.0, %v595
    %597 = vmatmul.f32.gmra.mxu0 %v556
    %v598 = vpop.f32.mrf.mxu0
    %v599 = vadd.f32 0.0, %v598
    %600 = vmatmul.f32.gmra.mxu0 %v557
    %v601 = vpop.f32.mrf.mxu0
    %v602 = vadd.f32 0.0, %v601
    %603 = vdwg.mxu0
    %v604 = vadd.f32 %v523, %v593
    %v605 = vadd.f32 %v526, %v596
    %v606 = vadd.f32 %v529, %v599
    %v607 = vadd.f32 %v532, %v602
    %v608 = vrot.slane %v372, 7
    %v609 = vrot.slane %v373, 7
    %v610 = vsel %vm235, %v608, %v609
    %v611 = vrot.slane %v374, 7
    %v612 = vsel %vm235, %v609, %v611
    %v613 = vrot.slane %v375, 7
    %v614 = vsel %vm235, %v611, %v613
    %v619 = vsel %vm235, 0.0, %v608
    %v620 = vsel %vm415, %v619, 0.0
    %v621 = vsel %vm416, %v610, 0.0
    %v622 = vsel %vm417, %v612, 0.0
    %v623 = vsel %vm418, %v614, 0.0
    %s624 = scalar_lea.vmem %s3, 384
    %v625 = vld [vmem:[%s624] sm:$0xff]
    %v626 = vld [vmem:[%s624 + $0x8] sm:$0xff]
    %v627 = vld [vmem:[%s624 + $0x10] sm:$0xff]
    %v628 = vld [vmem:[%s624 + $0x18] sm:$0xff]
    %v629 = vld [vmem:[%s624 + $0x20] sm:$0xff]
    %v630 = vld [vmem:[%s624 + $0x28] sm:$0xff]
    %v631 = vld [vmem:[%s624 + $0x30] sm:$0xff]
    %v632 = vld [vmem:[%s624 + $0x38] sm:$0xff]
    %v633 = vld [vmem:[%s624 + $0x40] sm:$0xff]
    %v634 = vld [vmem:[%s624 + $0x48] sm:$0xff]
    %v635 = vld [vmem:[%s624 + $0x50] sm:$0xff]
    %v636 = vld [vmem:[%s624 + $0x58] sm:$0xff]
    %v637 = vld [vmem:[%s624 + $0x60] sm:$0xff]
    %v638 = vld [vmem:[%s624 + $0x68] sm:$0xff]
    %v639 = vld [vmem:[%s624 + $0x70] sm:$0xff]
    %v640 = vld [vmem:[%s624 + $0x78] sm:$0xff]
    %641 = vmatpush.msra.mxu0 %v640
    %642 = vmatpush.msra.mxu0 %v639
    %643 = vmatpush.msra.mxu0 %v638
    %644 = vmatpush.msra.mxu0 %v637
    %645 = vmatpush.msra.mxu0 %v636
    %646 = vmatpush.msra.mxu0 %v635
    %647 = vmatpush.msra.mxu0 %v634
    %648 = vmatpush.msra.mxu0 %v633
    %649 = vmatpush.msra.mxu0 %v632
    %650 = vmatpush.msra.mxu0 %v631
    %651 = vmatpush.msra.mxu0 %v630
    %652 = vmatpush.msra.mxu0 %v629
    %653 = vmatpush.msra.mxu0 %v628
    %654 = vmatpush.msra.mxu0 %v627
    %655 = vmatpush.msra.mxu0 %v626
    %656 = vmatpush.msra.mxu0 %v625
    %657 = vmatmul.f32.gmra.mxu0 %v620
    %v658 = vpop.f32.mrf.mxu0
    %v659 = vadd.f32 0.0, %v658
    %660 = vmatmul.f32.gmra.mxu0 %v621
    %v661 = vpop.f32.mrf.mxu0
    %v662 = vadd.f32 0.0, %v661
    %663 = vmatmul.f32.gmra.mxu0 %v622
    %v664 = vpop.f32.mrf.mxu0
    %v665 = vadd.f32 0.0, %v664
    %666 = vmatmul.f32.gmra.mxu0 %v623
    %v667 = vpop.f32.mrf.mxu0
    %v668 = vadd.f32 0.0, %v667
    %669 = vdwg.mxu0
    %v670 = vadd.f32 %v604, %v659
    %v671 = vadd.f32 %v605, %v662
    %v672 = vadd.f32 %v606, %v665
    %v673 = vadd.f32 %v607, %v668
    %s674 = scalar_lea.vmem %s3, 512
    %v675 = vld [vmem:[%s674] sm:$0xff]
    %v676 = vld [vmem:[%s674 + $0x8] sm:$0xff]
    %v677 = vld [vmem:[%s674 + $0x10] sm:$0xff]
    %v678 = vld [vmem:[%s674 + $0x18] sm:$0xff]
    %v679 = vld [vmem:[%s674 + $0x20] sm:$0xff]
    %v680 = vld [vmem:[%s674 + $0x28] sm:$0xff]
    %v681 = vld [vmem:[%s674 + $0x30] sm:$0xff]
    %v682 = vld [vmem:[%s674 + $0x38] sm:$0xff]
    %v683 = vld [vmem:[%s674 + $0x40] sm:$0xff]
    %v684 = vld [vmem:[%s674 + $0x48] sm:$0xff]
    %v685 = vld [vmem:[%s674 + $0x50] sm:$0xff]
    %v686 = vld [vmem:[%s674 + $0x58] sm:$0xff]
    %v687 = vld [vmem:[%s674 + $0x60] sm:$0xff]
    %v688 = vld [vmem:[%s674 + $0x68] sm:$0xff]
    %v689 = vld [vmem:[%s674 + $0x70] sm:$0xff]
    %v690 = vld [vmem:[%s674 + $0x78] sm:$0xff]
    %691 = vmatpush.msra.mxu0 %v690
    %692 = vmatpush.msra.mxu0 %v689
    %693 = vmatpush.msra.mxu0 %v688
    %694 = vmatpush.msra.mxu0 %v687
    %695 = vmatpush.msra.mxu0 %v686
    %696 = vmatpush.msra.mxu0 %v685
    %697 = vmatpush.msra.mxu0 %v684
    %698 = vmatpush.msra.mxu0 %v683
    %699 = vmatpush.msra.mxu0 %v682
    %700 = vmatpush.msra.mxu0 %v681
    %701 = vmatpush.msra.mxu0 %v680
    %702 = vmatpush.msra.mxu0 %v679
    %703 = vmatpush.msra.mxu0 %v678
    %704 = vmatpush.msra.mxu0 %v677
    %705 = vmatpush.msra.mxu0 %v676
    %706 = vmatpush.msra.mxu0 %v675
    %707 = vmatmul.f32.gmra.mxu0 %v372
    %v708 = vpop.f32.mrf.mxu0
    %v709 = vadd.f32 0.0, %v708
    %710 = vmatmul.f32.gmra.mxu0 %v373
    %v711 = vpop.f32.mrf.mxu0
    %v712 = vadd.f32 0.0, %v711
    %713 = vmatmul.f32.gmra.mxu0 %v374
    %v714 = vpop.f32.mrf.mxu0
    %v715 = vadd.f32 0.0, %v714
    %716 = vmatmul.f32.gmra.mxu0 %v375
    %v717 = vpop.f32.mrf.mxu0
    %v718 = vadd.f32 0.0, %v717
    %719 = vdwg.mxu0
    %v720 = vadd.f32 %v670, %v709
    %v721 = vadd.f32 %v671, %v712
    %v722 = vadd.f32 %v672, %v715
    %v723 = vadd.f32 %v673, %v718
    %vm724 = vcmask 1046528
    %v725 = vrot.slane %v372, 1
    %v726 = vrot.slane %v373, 1
    %v727 = vsel %vm724, %v725, %v726
    %v728 = vrot.slane %v374, 1
    %v729 = vsel %vm724, %v726, %v728
    %v730 = vrot.slane %v375, 1
    %v731 = vsel %vm724, %v728, %v730
    %v736 = vsel %vm724, %v730, 0.0
    %v737 = vsel %vm546, %v727, 0.0
    %v738 = vsel %vm547, %v729, 0.0
    %v739 = vsel %vm548, %v731, 0.0
    %v740 = vsel %vm549, %v736, 0.0
    %s741 = scalar_lea.vmem %s3, 640
    %v742 = vld [vmem:[%s741] sm:$0xff]
    %v743 = vld [vmem:[%s741 + $0x8] sm:$0xff]
    %v744 = vld [vmem:[%s741 + $0x10] sm:$0xff]
    %v745 = vld [vmem:[%s741 + $0x18] sm:$0xff]
    %v746 = vld [vmem:[%s741 + $0x20] sm:$0xff]
    %v747 = vld [vmem:[%s741 + $0x28] sm:$0xff]
    %v748 = vld [vmem:[%s741 + $0x30] sm:$0xff]
    %v749 = vld [vmem:[%s741 + $0x38] sm:$0xff]
    %v750 = vld [vmem:[%s741 + $0x40] sm:$0xff]
    %v751 = vld [vmem:[%s741 + $0x48] sm:$0xff]
    %v752 = vld [vmem:[%s741 + $0x50] sm:$0xff]
    %v753 = vld [vmem:[%s741 + $0x58] sm:$0xff]
    %v754 = vld [vmem:[%s741 + $0x60] sm:$0xff]
    %v755 = vld [vmem:[%s741 + $0x68] sm:$0xff]
    %v756 = vld [vmem:[%s741 + $0x70] sm:$0xff]
    %v757 = vld [vmem:[%s741 + $0x78] sm:$0xff]
    %758 = vmatpush.msra.mxu0 %v757
    %759 = vmatpush.msra.mxu0 %v756
    %760 = vmatpush.msra.mxu0 %v755
    %761 = vmatpush.msra.mxu0 %v754
    %762 = vmatpush.msra.mxu0 %v753
    %763 = vmatpush.msra.mxu0 %v752
    %764 = vmatpush.msra.mxu0 %v751
    %765 = vmatpush.msra.mxu0 %v750
    %766 = vmatpush.msra.mxu0 %v749
    %767 = vmatpush.msra.mxu0 %v748
    %768 = vmatpush.msra.mxu0 %v747
    %769 = vmatpush.msra.mxu0 %v746
    %770 = vmatpush.msra.mxu0 %v745
    %771 = vmatpush.msra.mxu0 %v744
    %772 = vmatpush.msra.mxu0 %v743
    %773 = vmatpush.msra.mxu0 %v742
    %774 = vmatmul.f32.gmra.mxu0 %v737
    %v775 = vpop.f32.mrf.mxu0
    %v776 = vadd.f32 0.0, %v775
    %777 = vmatmul.f32.gmra.mxu0 %v738
    %v778 = vpop.f32.mrf.mxu0
    %v779 = vadd.f32 0.0, %v778
    %780 = vmatmul.f32.gmra.mxu0 %v739
    %v781 = vpop.f32.mrf.mxu0
    %v782 = vadd.f32 0.0, %v781
    %783 = vmatmul.f32.gmra.mxu0 %v740
    %v784 = vpop.f32.mrf.mxu0
    %v785 = vadd.f32 0.0, %v784
    %786 = vdwg.mxu0
    %v787 = vadd.f32 %v720, %v776
    %v788 = vadd.f32 %v721, %v779
    %v789 = vadd.f32 %v722, %v782
    %v790 = vadd.f32 %v723, %v785
    %v792 = vsel %vm398, %v404, 0.0
    %vm793 = vcmp.lt.s32.totalorder %v389, 3
    %vm794 = vcmp.lt.s32.totalorder %v390, 3
    %vm795 = vcmp.lt.s32.totalorder %v391, 3
    %vm796 = vcmp.lt.s32.totalorder %v392, 3
    %vm797 = vmand %vm793, %vm415
    %vm798 = vmand %vm794, %vm416
    %vm799 = vmand %vm795, %vm417
    %vm800 = vmand %vm796, %vm418
    %v801 = vsel %vm797, %v401, 0.0
    %v802 = vsel %vm798, %v403, 0.0
    %v803 = vsel %vm799, %v405, 0.0
    %v804 = vsel %vm800, %v792, 0.0
    %s805 = scalar_lea.vmem %s3, 768
    %v806 = vld [vmem:[%s805] sm:$0xff]
    %v807 = vld [vmem:[%s805 + $0x8] sm:$0xff]
    %v808 = vld [vmem:[%s805 + $0x10] sm:$0xff]
    %v809 = vld [vmem:[%s805 + $0x18] sm:$0xff]
    %v810 = vld [vmem:[%s805 + $0x20] sm:$0xff]
    %v811 = vld [vmem:[%s805 + $0x28] sm:$0xff]
    %v812 = vld [vmem:[%s805 + $0x30] sm:$0xff]
    %v813 = vld [vmem:[%s805 + $0x38] sm:$0xff]
    %v814 = vld [vmem:[%s805 + $0x40] sm:$0xff]
    %v815 = vld [vmem:[%s805 + $0x48] sm:$0xff]
    %v816 = vld [vmem:[%s805 + $0x50] sm:$0xff]
    %v817 = vld [vmem:[%s805 + $0x58] sm:$0xff]
    %v818 = vld [vmem:[%s805 + $0x60] sm:$0xff]
    %v819 = vld [vmem:[%s805 + $0x68] sm:$0xff]
    %v820 = vld [vmem:[%s805 + $0x70] sm:$0xff]
    %v821 = vld [vmem:[%s805 + $0x78] sm:$0xff]
    %822 = vmatpush.msra.mxu0 %v821
    %823 = vmatpush.msra.mxu0 %v820
    %824 = vmatpush.msra.mxu0 %v819
    %825 = vmatpush.msra.mxu0 %v818
    %826 = vmatpush.msra.mxu0 %v817
    %827 = vmatpush.msra.mxu0 %v816
    %828 = vmatpush.msra.mxu0 %v815
    %829 = vmatpush.msra.mxu0 %v814
    %830 = vmatpush.msra.mxu0 %v813
    %831 = vmatpush.msra.mxu0 %v812
    %832 = vmatpush.msra.mxu0 %v811
    %833 = vmatpush.msra.mxu0 %v810
    %834 = vmatpush.msra.mxu0 %v809
    %835 = vmatpush.msra.mxu0 %v808
    %836 = vmatpush.msra.mxu0 %v807
    %837 = vmatpush.msra.mxu0 %v806
    %838 = vmatmul.f32.gmra.mxu0 %v801
    %v839 = vpop.f32.mrf.mxu0
    %v840 = vadd.f32 0.0, %v839
    %841 = vmatmul.f32.gmra.mxu0 %v802
    %v842 = vpop.f32.mrf.mxu0
    %v843 = vadd.f32 0.0, %v842
    %844 = vmatmul.f32.gmra.mxu0 %v803
    %v845 = vpop.f32.mrf.mxu0
    %v846 = vadd.f32 0.0, %v845
    %847 = vmatmul.f32.gmra.mxu0 %v804
    %v848 = vpop.f32.mrf.mxu0
    %v849 = vadd.f32 0.0, %v848
    %850 = vdwg.mxu0
    %v851 = vadd.f32 %v787, %v840
    %v852 = vadd.f32 %v788, %v843
    %v853 = vadd.f32 %v789, %v846
    %v854 = vadd.f32 %v790, %v849
    %v856 = vsel %vm371, %v448, 0.0
    %v857 = vsel %vm793, %v445, 0.0
    %v858 = vsel %vm794, %v447, 0.0
    %v859 = vsel %vm795, %v449, 0.0
    %v860 = vsel %vm796, %v856, 0.0
    %s861 = scalar_lea.vmem %s3, 896
    %v862 = vld [vmem:[%s861] sm:$0xff]
    %v863 = vld [vmem:[%s861 + $0x8] sm:$0xff]
    %v864 = vld [vmem:[%s861 + $0x10] sm:$0xff]
    %v865 = vld [vmem:[%s861 + $0x18] sm:$0xff]
    %v866 = vld [vmem:[%s861 + $0x20] sm:$0xff]
    %v867 = vld [vmem:[%s861 + $0x28] sm:$0xff]
    %v868 = vld [vmem:[%s861 + $0x30] sm:$0xff]
    %v869 = vld [vmem:[%s861 + $0x38] sm:$0xff]
    %v870 = vld [vmem:[%s861 + $0x40] sm:$0xff]
    %v871 = vld [vmem:[%s861 + $0x48] sm:$0xff]
    %v872 = vld [vmem:[%s861 + $0x50] sm:$0xff]
    %v873 = vld [vmem:[%s861 + $0x58] sm:$0xff]
    %v874 = vld [vmem:[%s861 + $0x60] sm:$0xff]
    %v875 = vld [vmem:[%s861 + $0x68] sm:$0xff]
    %v876 = vld [vmem:[%s861 + $0x70] sm:$0xff]
    %v877 = vld [vmem:[%s861 + $0x78] sm:$0xff]
    %878 = vmatpush.msra.mxu0 %v877
    %879 = vmatpush.msra.mxu0 %v876
    %880 = vmatpush.msra.mxu0 %v875
    %881 = vmatpush.msra.mxu0 %v874
    %882 = vmatpush.msra.mxu0 %v873
    %883 = vmatpush.msra.mxu0 %v872
    %884 = vmatpush.msra.mxu0 %v871
    %885 = vmatpush.msra.mxu0 %v870
    %886 = vmatpush.msra.mxu0 %v869
    %887 = vmatpush.msra.mxu0 %v868
    %888 = vmatpush.msra.mxu0 %v867
    %889 = vmatpush.msra.mxu0 %v866
    %890 = vmatpush.msra.mxu0 %v865
    %891 = vmatpush.msra.mxu0 %v864
    %892 = vmatpush.msra.mxu0 %v863
    %893 = vmatpush.msra.mxu0 %v862
    %894 = vmatmul.f32.gmra.mxu0 %v857
    %v895 = vpop.f32.mrf.mxu0
    %v896 = vadd.f32 0.0, %v895
    %897 = vmatmul.f32.gmra.mxu0 %v858
    %v898 = vpop.f32.mrf.mxu0
    %v899 = vadd.f32 0.0, %v898
    %900 = vmatmul.f32.gmra.mxu0 %v859
    %v901 = vpop.f32.mrf.mxu0
    %v902 = vadd.f32 0.0, %v901
    %903 = vmatmul.f32.gmra.mxu0 %v860
    %v904 = vpop.f32.mrf.mxu0
    %v905 = vadd.f32 0.0, %v904
    %906 = vdwg.mxu0
    %v907 = vadd.f32 %v851, %v896
    %v908 = vadd.f32 %v852, %v899
    %v909 = vadd.f32 %v853, %v902
    %v910 = vadd.f32 %v854, %v905
    %v912 = vsel %vm239, %v539, 0.0
    %vm913 = vmand %vm793, %vm546
    %vm914 = vmand %vm794, %vm547
    %vm915 = vmand %vm795, %vm548
    %vm916 = vmand %vm796, %vm549
    %v917 = vsel %vm913, %v536, 0.0
    %v918 = vsel %vm914, %v538, 0.0
    %v919 = vsel %vm915, %v540, 0.0
    %v920 = vsel %vm916, %v912, 0.0
    %s921 = scalar_lea.vmem %s3, 1024
    %v922 = vld [vmem:[%s921] sm:$0xff]
    %v923 = vld [vmem:[%s921 + $0x8] sm:$0xff]
    %v924 = vld [vmem:[%s921 + $0x10] sm:$0xff]
    %v925 = vld [vmem:[%s921 + $0x18] sm:$0xff]
    %v926 = vld [vmem:[%s921 + $0x20] sm:$0xff]
    %v927 = vld [vmem:[%s921 + $0x28] sm:$0xff]
    %v928 = vld [vmem:[%s921 + $0x30] sm:$0xff]
    %v929 = vld [vmem:[%s921 + $0x38] sm:$0xff]
    %v930 = vld [vmem:[%s921 + $0x40] sm:$0xff]
    %v931 = vld [vmem:[%s921 + $0x48] sm:$0xff]
    %v932 = vld [vmem:[%s921 + $0x50] sm:$0xff]
    %v933 = vld [vmem:[%s921 + $0x58] sm:$0xff]
    %v934 = vld [vmem:[%s921 + $0x60] sm:$0xff]
    %v935 = vld [vmem:[%s921 + $0x68] sm:$0xff]
    %v936 = vld [vmem:[%s921 + $0x70] sm:$0xff]
    %v937 = vld [vmem:[%s921 + $0x78] sm:$0xff]
    %938 = vmatpush.msra.mxu0 %v937
    %939 = vmatpush.msra.mxu0 %v936
    %940 = vmatpush.msra.mxu0 %v935
    %941 = vmatpush.msra.mxu0 %v934
    %942 = vmatpush.msra.mxu0 %v933
    %943 = vmatpush.msra.mxu0 %v932
    %944 = vmatpush.msra.mxu0 %v931
    %945 = vmatpush.msra.mxu0 %v930
    %946 = vmatpush.msra.mxu0 %v929
    %947 = vmatpush.msra.mxu0 %v928
    %948 = vmatpush.msra.mxu0 %v927
    %949 = vmatpush.msra.mxu0 %v926
    %950 = vmatpush.msra.mxu0 %v925
    %951 = vmatpush.msra.mxu0 %v924
    %952 = vmatpush.msra.mxu0 %v923
    %953 = vmatpush.msra.mxu0 %v922
    %954 = vmatmul.f32.gmra.mxu0 %v917
    %v955 = vpop.f32.mrf.mxu0
    %v956 = vadd.f32 0.0, %v955
    %957 = vmatmul.f32.gmra.mxu0 %v918
    %v958 = vpop.f32.mrf.mxu0
    %v959 = vadd.f32 0.0, %v958
    %960 = vmatmul.f32.gmra.mxu0 %v919
    %v961 = vpop.f32.mrf.mxu0
    %v962 = vadd.f32 0.0, %v961
    %963 = vmatmul.f32.gmra.mxu0 %v920
    %v964 = vpop.f32.mrf.mxu0
    %v965 = vadd.f32 0.0, %v964
    %966 = vdwg.mxu0
    %v967 = vadd.f32 %v907, %v956
    %v968 = vadd.f32 %v908, %v959
    %v969 = vadd.f32 %v909, %v962
    %v970 = vadd.f32 %v910, %v965
    %v972 = vperm.slane %v393, 0
    %v974 = vadd.f32 %v967, %v972
    %v975 = vadd.f32 %v968, %v972
    %v976 = vadd.f32 %v969, %v972
    %v977 = vadd.f32 %v970, %v972
    %v982 = vrot.slane %v974, 3
    %v983 = vrot.slane %v975, 3
    %v984 = vsel %vm398, %v982, %v983
    %v985 = vrot.slane %v976, 3
    %v986 = vsel %vm398, %v983, %v985
    %v987 = vrot.slane %v977, 3
    %v988 = vsel %vm398, %v985, %v987
    %v993 = vsel %vm398, 0.0, %v982
    %v994 = vsel %vm419, %v993, 0.0
    %v995 = vsel %vm420, %v984, 0.0
    %v996 = vsel %vm421, %v986, 0.0
    %v997 = vsel %vm422, %v988, 0.0
    %v998 = vld [vmem:[%s5] sm:$0xff]
    %v999 = vld [vmem:[%s5 + $0x8] sm:$0xff]
    %v1000 = vld [vmem:[%s5 + $0x10] sm:$0xff]
    %v1001 = vld [vmem:[%s5 + $0x18] sm:$0xff]
    %v1002 = vld [vmem:[%s5 + $0x20] sm:$0xff]
    %v1003 = vld [vmem:[%s5 + $0x28] sm:$0xff]
    %v1004 = vld [vmem:[%s5 + $0x30] sm:$0xff]
    %v1005 = vld [vmem:[%s5 + $0x38] sm:$0xff]
    %v1006 = vld [vmem:[%s5 + $0x40] sm:$0xff]
    %v1007 = vld [vmem:[%s5 + $0x48] sm:$0xff]
    %v1008 = vld [vmem:[%s5 + $0x50] sm:$0xff]
    %v1009 = vld [vmem:[%s5 + $0x58] sm:$0xff]
    %v1010 = vld [vmem:[%s5 + $0x60] sm:$0xff]
    %v1011 = vld [vmem:[%s5 + $0x68] sm:$0xff]
    %v1012 = vld [vmem:[%s5 + $0x70] sm:$0xff]
    %v1013 = vld [vmem:[%s5 + $0x78] sm:$0xff]
    %v1014 = vrot.slane %v974, 4
    %v1015 = vrot.slane %v975, 4
    %v1016 = vsel %vm371, %v1014, %v1015
    %v1017 = vrot.slane %v976, 4
    %v1018 = vsel %vm371, %v1015, %v1017
    %v1019 = vrot.slane %v977, 4
    %v1020 = vsel %vm371, %v1017, %v1019
    %v1025 = vsel %vm371, 0.0, %v1014
    %v1026 = vsel %vm411, %v1025, 0.0
    %v1027 = vsel %vm412, %v1016, 0.0
    %v1028 = vsel %vm413, %v1018, 0.0
    %v1029 = vsel %vm414, %v1020, 0.0
    %s1030 = scalar_lea.vmem %s5, 128
    %v1031 = vld [vmem:[%s1030] sm:$0xff]
    %v1032 = vld [vmem:[%s1030 + $0x8] sm:$0xff]
    %v1033 = vld [vmem:[%s1030 + $0x10] sm:$0xff]
    %v1034 = vld [vmem:[%s1030 + $0x18] sm:$0xff]
    %v1035 = vld [vmem:[%s1030 + $0x20] sm:$0xff]
    %v1036 = vld [vmem:[%s1030 + $0x28] sm:$0xff]
    %v1037 = vld [vmem:[%s1030 + $0x30] sm:$0xff]
    %v1038 = vld [vmem:[%s1030 + $0x38] sm:$0xff]
    %v1039 = vld [vmem:[%s1030 + $0x40] sm:$0xff]
    %v1040 = vld [vmem:[%s1030 + $0x48] sm:$0xff]
    %v1041 = vld [vmem:[%s1030 + $0x50] sm:$0xff]
    %v1042 = vld [vmem:[%s1030 + $0x58] sm:$0xff]
    %v1043 = vld [vmem:[%s1030 + $0x60] sm:$0xff]
    %v1044 = vld [vmem:[%s1030 + $0x68] sm:$0xff]
    %v1045 = vld [vmem:[%s1030 + $0x70] sm:$0xff]
    %v1046 = vld [vmem:[%s1030 + $0x78] sm:$0xff]
    %1047 = vmatpush.msra.mxu0 %v1046
    %1048 = vmatpush.msra.mxu0 %v1045
    %1049 = vmatpush.msra.mxu0 %v1044
    %1050 = vmatpush.msra.mxu0 %v1043
    %1051 = vmatpush.msra.mxu0 %v1042
    %1052 = vmatpush.msra.mxu0 %v1041
    %1053 = vmatpush.msra.mxu0 %v1040
    %1054 = vmatpush.msra.mxu0 %v1039
    %1055 = vmatpush.msra.mxu0 %v1038
    %1056 = vmatpush.msra.mxu0 %v1037
    %1057 = vmatpush.msra.mxu0 %v1036
    %1058 = vmatpush.msra.mxu0 %v1035
    %1059 = vmatpush.msra.mxu0 %v1034
    %1060 = vmatpush.msra.mxu0 %v1033
    %1061 = vmatpush.msra.mxu0 %v1032
    %1062 = vmatpush.msra.mxu0 %v1031
    %1063 = vmatmul.f32.gmra.mxu0 %v1026
    %v1064 = vpop.f32.mrf.mxu0
    %v1065 = vadd.f32 0.0, %v1064
    %1066 = vmatmul.f32.gmra.mxu0 %v1027
    %v1067 = vpop.f32.mrf.mxu0
    %v1068 = vadd.f32 0.0, %v1067
    %1069 = vmatmul.f32.gmra.mxu0 %v1028
    %v1070 = vpop.f32.mrf.mxu0
    %v1071 = vadd.f32 0.0, %v1070
    %1072 = vmatmul.f32.gmra.mxu0 %v1029
    %v1073 = vpop.f32.mrf.mxu0
    %v1074 = vadd.f32 0.0, %v1073
    %1075 = vdwg.mxu0
    %1076 = vmatpush.msra.mxu0 %v1013
    %1077 = vmatpush.msra.mxu0 %v1012
    %1078 = vmatpush.msra.mxu0 %v1011
    %1079 = vmatpush.msra.mxu0 %v1010
    %1080 = vmatpush.msra.mxu0 %v1009
    %1081 = vmatpush.msra.mxu0 %v1008
    %1082 = vmatpush.msra.mxu0 %v1007
    %1083 = vmatpush.msra.mxu0 %v1006
    %1084 = vmatpush.msra.mxu0 %v1005
    %1085 = vmatpush.msra.mxu0 %v1004
    %1086 = vmatpush.msra.mxu0 %v1003
    %1087 = vmatpush.msra.mxu0 %v1002
    %1088 = vmatpush.msra.mxu0 %v1001
    %1089 = vmatpush.msra.mxu0 %v1000
    %1090 = vmatpush.msra.mxu0 %v999
    %1091 = vmatpush.msra.mxu0 %v998
    %1092 = vmatmul.f32.gmra.mxu0 %v994
    %v1093 = vpop.f32.mrf.mxu0
    %v1094 = vadd.f32 %v1065, %v1093
    %1095 = vmatmul.f32.gmra.mxu0 %v995
    %v1096 = vpop.f32.mrf.mxu0
    %v1097 = vadd.f32 %v1068, %v1096
    %1098 = vmatmul.f32.gmra.mxu0 %v996
    %v1099 = vpop.f32.mrf.mxu0
    %v1100 = vadd.f32 %v1071, %v1099
    %1101 = vmatmul.f32.gmra.mxu0 %v997
    %v1102 = vpop.f32.mrf.mxu0
    %v1103 = vadd.f32 %v1074, %v1102
    %1104 = vdwg.mxu0
    %v1105 = vrot.slane %v974, 5
    %v1106 = vrot.slane %v975, 5
    %v1107 = vsel %vm239, %v1105, %v1106
    %v1108 = vrot.slane %v976, 5
    %v1109 = vsel %vm239, %v1106, %v1108
    %v1110 = vrot.slane %v977, 5
    %v1111 = vsel %vm239, %v1108, %v1110
    %v1116 = vsel %vm239, 0.0, %v1105
    %v1117 = vsel %vm550, %v1116, 0.0
    %v1118 = vsel %vm551, %v1107, 0.0
    %v1119 = vsel %vm552, %v1109, 0.0
    %v1120 = vsel %vm553, %v1111, 0.0
    %s1121 = scalar_lea.vmem %s5, 256
    %v1122 = vld [vmem:[%s1121] sm:$0xff]
    %v1123 = vld [vmem:[%s1121 + $0x8] sm:$0xff]
    %v1124 = vld [vmem:[%s1121 + $0x10] sm:$0xff]
    %v1125 = vld [vmem:[%s1121 + $0x18] sm:$0xff]
    %v1126 = vld [vmem:[%s1121 + $0x20] sm:$0xff]
    %v1127 = vld [vmem:[%s1121 + $0x28] sm:$0xff]
    %v1128 = vld [vmem:[%s1121 + $0x30] sm:$0xff]
    %v1129 = vld [vmem:[%s1121 + $0x38] sm:$0xff]
    %v1130 = vld [vmem:[%s1121 + $0x40] sm:$0xff]
    %v1131 = vld [vmem:[%s1121 + $0x48] sm:$0xff]
    %v1132 = vld [vmem:[%s1121 + $0x50] sm:$0xff]
    %v1133 = vld [vmem:[%s1121 + $0x58] sm:$0xff]
    %v1134 = vld [vmem:[%s1121 + $0x60] sm:$0xff]
    %v1135 = vld [vmem:[%s1121 + $0x68] sm:$0xff]
    %v1136 = vld [vmem:[%s1121 + $0x70] sm:$0xff]
    %v1137 = vld [vmem:[%s1121 + $0x78] sm:$0xff]
    %1138 = vmatpush.msra.mxu0 %v1137
    %1139 = vmatpush.msra.mxu0 %v1136
    %1140 = vmatpush.msra.mxu0 %v1135
    %1141 = vmatpush.msra.mxu0 %v1134
    %1142 = vmatpush.msra.mxu0 %v1133
    %1143 = vmatpush.msra.mxu0 %v1132
    %1144 = vmatpush.msra.mxu0 %v1131
    %1145 = vmatpush.msra.mxu0 %v1130
    %1146 = vmatpush.msra.mxu0 %v1129
    %1147 = vmatpush.msra.mxu0 %v1128
    %1148 = vmatpush.msra.mxu0 %v1127
    %1149 = vmatpush.msra.mxu0 %v1126
    %1150 = vmatpush.msra.mxu0 %v1125
    %1151 = vmatpush.msra.mxu0 %v1124
    %1152 = vmatpush.msra.mxu0 %v1123
    %1153 = vmatpush.msra.mxu0 %v1122
    %1154 = vmatmul.f32.gmra.mxu0 %v1117
    %v1155 = vpop.f32.mrf.mxu0
    %v1156 = vadd.f32 0.0, %v1155
    %1157 = vmatmul.f32.gmra.mxu0 %v1118
    %v1158 = vpop.f32.mrf.mxu0
    %v1159 = vadd.f32 0.0, %v1158
    %1160 = vmatmul.f32.gmra.mxu0 %v1119
    %v1161 = vpop.f32.mrf.mxu0
    %v1162 = vadd.f32 0.0, %v1161
    %1163 = vmatmul.f32.gmra.mxu0 %v1120
    %v1164 = vpop.f32.mrf.mxu0
    %v1165 = vadd.f32 0.0, %v1164
    %1166 = vdwg.mxu0
    %v1167 = vadd.f32 %v1094, %v1156
    %v1168 = vadd.f32 %v1097, %v1159
    %v1169 = vadd.f32 %v1100, %v1162
    %v1170 = vadd.f32 %v1103, %v1165
    %v1171 = vrot.slane %v974, 7
    %v1172 = vrot.slane %v975, 7
    %v1173 = vsel %vm235, %v1171, %v1172
    %v1174 = vrot.slane %v976, 7
    %v1175 = vsel %vm235, %v1172, %v1174
    %v1176 = vrot.slane %v977, 7
    %v1177 = vsel %vm235, %v1174, %v1176
    %v1182 = vsel %vm235, 0.0, %v1171
    %v1183 = vsel %vm415, %v1182, 0.0
    %v1184 = vsel %vm416, %v1173, 0.0
    %v1185 = vsel %vm417, %v1175, 0.0
    %v1186 = vsel %vm418, %v1177, 0.0
    %s1187 = scalar_lea.vmem %s5, 384
    %v1188 = vld [vmem:[%s1187] sm:$0xff]
    %v1189 = vld [vmem:[%s1187 + $0x8] sm:$0xff]
    %v1190 = vld [vmem:[%s1187 + $0x10] sm:$0xff]
    %v1191 = vld [vmem:[%s1187 + $0x18] sm:$0xff]
    %v1192 = vld [vmem:[%s1187 + $0x20] sm:$0xff]
    %v1193 = vld [vmem:[%s1187 + $0x28] sm:$0xff]
    %v1194 = vld [vmem:[%s1187 + $0x30] sm:$0xff]
    %v1195 = vld [vmem:[%s1187 + $0x38] sm:$0xff]
    %v1196 = vld [vmem:[%s1187 + $0x40] sm:$0xff]
    %v1197 = vld [vmem:[%s1187 + $0x48] sm:$0xff]
    %v1198 = vld [vmem:[%s1187 + $0x50] sm:$0xff]
    %v1199 = vld [vmem:[%s1187 + $0x58] sm:$0xff]
    %v1200 = vld [vmem:[%s1187 + $0x60] sm:$0xff]
    %v1201 = vld [vmem:[%s1187 + $0x68] sm:$0xff]
    %v1202 = vld [vmem:[%s1187 + $0x70] sm:$0xff]
    %v1203 = vld [vmem:[%s1187 + $0x78] sm:$0xff]
    %1204 = vmatpush.msra.mxu0 %v1203
    %1205 = vmatpush.msra.mxu0 %v1202
    %1206 = vmatpush.msra.mxu0 %v1201
    %1207 = vmatpush.msra.mxu0 %v1200
    %1208 = vmatpush.msra.mxu0 %v1199
    %1209 = vmatpush.msra.mxu0 %v1198
    %1210 = vmatpush.msra.mxu0 %v1197
    %1211 = vmatpush.msra.mxu0 %v1196
    %1212 = vmatpush.msra.mxu0 %v1195
    %1213 = vmatpush.msra.mxu0 %v1194
    %1214 = vmatpush.msra.mxu0 %v1193
    %1215 = vmatpush.msra.mxu0 %v1192
    %1216 = vmatpush.msra.mxu0 %v1191
    %1217 = vmatpush.msra.mxu0 %v1190
    %1218 = vmatpush.msra.mxu0 %v1189
    %1219 = vmatpush.msra.mxu0 %v1188
    %1220 = vmatmul.f32.gmra.mxu0 %v1183
    %v1221 = vpop.f32.mrf.mxu0
    %v1222 = vadd.f32 0.0, %v1221
    %1223 = vmatmul.f32.gmra.mxu0 %v1184
    %v1224 = vpop.f32.mrf.mxu0
    %v1225 = vadd.f32 0.0, %v1224
    %1226 = vmatmul.f32.gmra.mxu0 %v1185
    %v1227 = vpop.f32.mrf.mxu0
    %v1228 = vadd.f32 0.0, %v1227
    %1229 = vmatmul.f32.gmra.mxu0 %v1186
    %v1230 = vpop.f32.mrf.mxu0
    %v1231 = vadd.f32 0.0, %v1230
    %1232 = vdwg.mxu0
    %v1233 = vadd.f32 %v1167, %v1222
    %v1234 = vadd.f32 %v1168, %v1225
    %v1235 = vadd.f32 %v1169, %v1228
    %v1236 = vadd.f32 %v1170, %v1231
    %s1237 = scalar_lea.vmem %s5, 512
    %v1238 = vld [vmem:[%s1237] sm:$0xff]
    %v1239 = vld [vmem:[%s1237 + $0x8] sm:$0xff]
    %v1240 = vld [vmem:[%s1237 + $0x10] sm:$0xff]
    %v1241 = vld [vmem:[%s1237 + $0x18] sm:$0xff]
    %v1242 = vld [vmem:[%s1237 + $0x20] sm:$0xff]
    %v1243 = vld [vmem:[%s1237 + $0x28] sm:$0xff]
    %v1244 = vld [vmem:[%s1237 + $0x30] sm:$0xff]
    %v1245 = vld [vmem:[%s1237 + $0x38] sm:$0xff]
    %v1246 = vld [vmem:[%s1237 + $0x40] sm:$0xff]
    %v1247 = vld [vmem:[%s1237 + $0x48] sm:$0xff]
    %v1248 = vld [vmem:[%s1237 + $0x50] sm:$0xff]
    %v1249 = vld [vmem:[%s1237 + $0x58] sm:$0xff]
    %v1250 = vld [vmem:[%s1237 + $0x60] sm:$0xff]
    %v1251 = vld [vmem:[%s1237 + $0x68] sm:$0xff]
    %v1252 = vld [vmem:[%s1237 + $0x70] sm:$0xff]
    %v1253 = vld [vmem:[%s1237 + $0x78] sm:$0xff]
    %1254 = vmatpush.msra.mxu0 %v1253
    %1255 = vmatpush.msra.mxu0 %v1252
    %1256 = vmatpush.msra.mxu0 %v1251
    %1257 = vmatpush.msra.mxu0 %v1250
    %1258 = vmatpush.msra.mxu0 %v1249
    %1259 = vmatpush.msra.mxu0 %v1248
    %1260 = vmatpush.msra.mxu0 %v1247
    %1261 = vmatpush.msra.mxu0 %v1246
    %1262 = vmatpush.msra.mxu0 %v1245
    %1263 = vmatpush.msra.mxu0 %v1244
    %1264 = vmatpush.msra.mxu0 %v1243
    %1265 = vmatpush.msra.mxu0 %v1242
    %1266 = vmatpush.msra.mxu0 %v1241
    %1267 = vmatpush.msra.mxu0 %v1240
    %1268 = vmatpush.msra.mxu0 %v1239
    %1269 = vmatpush.msra.mxu0 %v1238
    %1270 = vmatmul.f32.gmra.mxu0 %v974
    %v1271 = vpop.f32.mrf.mxu0
    %v1272 = vadd.f32 0.0, %v1271
    %1273 = vmatmul.f32.gmra.mxu0 %v975
    %v1274 = vpop.f32.mrf.mxu0
    %v1275 = vadd.f32 0.0, %v1274
    %1276 = vmatmul.f32.gmra.mxu0 %v976
    %v1277 = vpop.f32.mrf.mxu0
    %v1278 = vadd.f32 0.0, %v1277
    %1279 = vmatmul.f32.gmra.mxu0 %v977
    %v1280 = vpop.f32.mrf.mxu0
    %v1281 = vadd.f32 0.0, %v1280
    %1282 = vdwg.mxu0
    %v1283 = vadd.f32 %v1233, %v1272
    %v1284 = vadd.f32 %v1234, %v1275
    %v1285 = vadd.f32 %v1235, %v1278
    %v1286 = vadd.f32 %v1236, %v1281
    %v1287 = vrot.slane %v974, 1
    %v1288 = vrot.slane %v975, 1
    %v1289 = vsel %vm724, %v1287, %v1288
    %v1290 = vrot.slane %v976, 1
    %v1291 = vsel %vm724, %v1288, %v1290
    %v1292 = vrot.slane %v977, 1
    %v1293 = vsel %vm724, %v1290, %v1292
    %v1298 = vsel %vm724, %v1292, 0.0
    %v1299 = vsel %vm546, %v1289, 0.0
    %v1300 = vsel %vm547, %v1291, 0.0
    %v1301 = vsel %vm548, %v1293, 0.0
    %v1302 = vsel %vm549, %v1298, 0.0
    %s1303 = scalar_lea.vmem %s5, 640
    %v1304 = vld [vmem:[%s1303] sm:$0xff]
    %v1305 = vld [vmem:[%s1303 + $0x8] sm:$0xff]
    %v1306 = vld [vmem:[%s1303 + $0x10] sm:$0xff]
    %v1307 = vld [vmem:[%s1303 + $0x18] sm:$0xff]
    %v1308 = vld [vmem:[%s1303 + $0x20] sm:$0xff]
    %v1309 = vld [vmem:[%s1303 + $0x28] sm:$0xff]
    %v1310 = vld [vmem:[%s1303 + $0x30] sm:$0xff]
    %v1311 = vld [vmem:[%s1303 + $0x38] sm:$0xff]
    %v1312 = vld [vmem:[%s1303 + $0x40] sm:$0xff]
    %v1313 = vld [vmem:[%s1303 + $0x48] sm:$0xff]
    %v1314 = vld [vmem:[%s1303 + $0x50] sm:$0xff]
    %v1315 = vld [vmem:[%s1303 + $0x58] sm:$0xff]
    %v1316 = vld [vmem:[%s1303 + $0x60] sm:$0xff]
    %v1317 = vld [vmem:[%s1303 + $0x68] sm:$0xff]
    %v1318 = vld [vmem:[%s1303 + $0x70] sm:$0xff]
    %v1319 = vld [vmem:[%s1303 + $0x78] sm:$0xff]
    %1320 = vmatpush.msra.mxu0 %v1319
    %1321 = vmatpush.msra.mxu0 %v1318
    %1322 = vmatpush.msra.mxu0 %v1317
    %1323 = vmatpush.msra.mxu0 %v1316
    %1324 = vmatpush.msra.mxu0 %v1315
    %1325 = vmatpush.msra.mxu0 %v1314
    %1326 = vmatpush.msra.mxu0 %v1313
    %1327 = vmatpush.msra.mxu0 %v1312
    %1328 = vmatpush.msra.mxu0 %v1311
    %1329 = vmatpush.msra.mxu0 %v1310
    %1330 = vmatpush.msra.mxu0 %v1309
    %1331 = vmatpush.msra.mxu0 %v1308
    %1332 = vmatpush.msra.mxu0 %v1307
    %1333 = vmatpush.msra.mxu0 %v1306
    %1334 = vmatpush.msra.mxu0 %v1305
    %1335 = vmatpush.msra.mxu0 %v1304
    %1336 = vmatmul.f32.gmra.mxu0 %v1299
    %v1337 = vpop.f32.mrf.mxu0
    %v1338 = vadd.f32 0.0, %v1337
    %1339 = vmatmul.f32.gmra.mxu0 %v1300
    %v1340 = vpop.f32.mrf.mxu0
    %v1341 = vadd.f32 0.0, %v1340
    %1342 = vmatmul.f32.gmra.mxu0 %v1301
    %v1343 = vpop.f32.mrf.mxu0
    %v1344 = vadd.f32 0.0, %v1343
    %1345 = vmatmul.f32.gmra.mxu0 %v1302
    %v1346 = vpop.f32.mrf.mxu0
    %v1347 = vadd.f32 0.0, %v1346
    %1348 = vdwg.mxu0
    %v1349 = vadd.f32 %v1283, %v1338
    %v1350 = vadd.f32 %v1284, %v1341
    %v1351 = vadd.f32 %v1285, %v1344
    %v1352 = vadd.f32 %v1286, %v1347
    %v1354 = vsel %vm398, %v987, 0.0
    %v1355 = vsel %vm797, %v984, 0.0
    %v1356 = vsel %vm798, %v986, 0.0
    %v1357 = vsel %vm799, %v988, 0.0
    %v1358 = vsel %vm800, %v1354, 0.0
    %s1359 = scalar_lea.vmem %s5, 768
    %v1360 = vld [vmem:[%s1359] sm:$0xff]
    %v1361 = vld [vmem:[%s1359 + $0x8] sm:$0xff]
    %v1362 = vld [vmem:[%s1359 + $0x10] sm:$0xff]
    %v1363 = vld [vmem:[%s1359 + $0x18] sm:$0xff]
    %v1364 = vld [vmem:[%s1359 + $0x20] sm:$0xff]
    %v1365 = vld [vmem:[%s1359 + $0x28] sm:$0xff]
    %v1366 = vld [vmem:[%s1359 + $0x30] sm:$0xff]
    %v1367 = vld [vmem:[%s1359 + $0x38] sm:$0xff]
    %v1368 = vld [vmem:[%s1359 + $0x40] sm:$0xff]
    %v1369 = vld [vmem:[%s1359 + $0x48] sm:$0xff]
    %v1370 = vld [vmem:[%s1359 + $0x50] sm:$0xff]
    %v1371 = vld [vmem:[%s1359 + $0x58] sm:$0xff]
    %v1372 = vld [vmem:[%s1359 + $0x60] sm:$0xff]
    %v1373 = vld [vmem:[%s1359 + $0x68] sm:$0xff]
    %v1374 = vld [vmem:[%s1359 + $0x70] sm:$0xff]
    %v1375 = vld [vmem:[%s1359 + $0x78] sm:$0xff]
    %1376 = vmatpush.msra.mxu0 %v1375
    %1377 = vmatpush.msra.mxu0 %v1374
    %1378 = vmatpush.msra.mxu0 %v1373
    %1379 = vmatpush.msra.mxu0 %v1372
    %1380 = vmatpush.msra.mxu0 %v1371
    %1381 = vmatpush.msra.mxu0 %v1370
    %1382 = vmatpush.msra.mxu0 %v1369
    %1383 = vmatpush.msra.mxu0 %v1368
    %1384 = vmatpush.msra.mxu0 %v1367
    %1385 = vmatpush.msra.mxu0 %v1366
    %1386 = vmatpush.msra.mxu0 %v1365
    %1387 = vmatpush.msra.mxu0 %v1364
    %1388 = vmatpush.msra.mxu0 %v1363
    %1389 = vmatpush.msra.mxu0 %v1362
    %1390 = vmatpush.msra.mxu0 %v1361
    %1391 = vmatpush.msra.mxu0 %v1360
    %1392 = vmatmul.f32.gmra.mxu0 %v1355
    %v1393 = vpop.f32.mrf.mxu0
    %v1394 = vadd.f32 0.0, %v1393
    %1395 = vmatmul.f32.gmra.mxu0 %v1356
    %v1396 = vpop.f32.mrf.mxu0
    %v1397 = vadd.f32 0.0, %v1396
    %1398 = vmatmul.f32.gmra.mxu0 %v1357
    %v1399 = vpop.f32.mrf.mxu0
    %v1400 = vadd.f32 0.0, %v1399
    %1401 = vmatmul.f32.gmra.mxu0 %v1358
    %v1402 = vpop.f32.mrf.mxu0
    %v1403 = vadd.f32 0.0, %v1402
    %1404 = vdwg.mxu0
    %v1405 = vadd.f32 %v1349, %v1394
    %v1406 = vadd.f32 %v1350, %v1397
    %v1407 = vadd.f32 %v1351, %v1400
    %v1408 = vadd.f32 %v1352, %v1403
    %v1410 = vsel %vm371, %v1019, 0.0
    %v1411 = vsel %vm793, %v1016, 0.0
    %v1412 = vsel %vm794, %v1018, 0.0
    %v1413 = vsel %vm795, %v1020, 0.0
    %v1414 = vsel %vm796, %v1410, 0.0
    %s1415 = scalar_lea.vmem %s5, 896
    %v1416 = vld [vmem:[%s1415] sm:$0xff]
    %v1417 = vld [vmem:[%s1415 + $0x8] sm:$0xff]
    %v1418 = vld [vmem:[%s1415 + $0x10] sm:$0xff]
    %v1419 = vld [vmem:[%s1415 + $0x18] sm:$0xff]
    %v1420 = vld [vmem:[%s1415 + $0x20] sm:$0xff]
    %v1421 = vld [vmem:[%s1415 + $0x28] sm:$0xff]
    %v1422 = vld [vmem:[%s1415 + $0x30] sm:$0xff]
    %v1423 = vld [vmem:[%s1415 + $0x38] sm:$0xff]
    %v1424 = vld [vmem:[%s1415 + $0x40] sm:$0xff]
    %v1425 = vld [vmem:[%s1415 + $0x48] sm:$0xff]
    %v1426 = vld [vmem:[%s1415 + $0x50] sm:$0xff]
    %v1427 = vld [vmem:[%s1415 + $0x58] sm:$0xff]
    %v1428 = vld [vmem:[%s1415 + $0x60] sm:$0xff]
    %v1429 = vld [vmem:[%s1415 + $0x68] sm:$0xff]
    %v1430 = vld [vmem:[%s1415 + $0x70] sm:$0xff]
    %v1431 = vld [vmem:[%s1415 + $0x78] sm:$0xff]
    %1432 = vmatpush.msra.mxu0 %v1431
    %1433 = vmatpush.msra.mxu0 %v1430
    %1434 = vmatpush.msra.mxu0 %v1429
    %1435 = vmatpush.msra.mxu0 %v1428
    %1436 = vmatpush.msra.mxu0 %v1427
    %1437 = vmatpush.msra.mxu0 %v1426
    %1438 = vmatpush.msra.mxu0 %v1425
    %1439 = vmatpush.msra.mxu0 %v1424
    %1440 = vmatpush.msra.mxu0 %v1423
    %1441 = vmatpush.msra.mxu0 %v1422
    %1442 = vmatpush.msra.mxu0 %v1421
    %1443 = vmatpush.msra.mxu0 %v1420
    %1444 = vmatpush.msra.mxu0 %v1419
    %1445 = vmatpush.msra.mxu0 %v1418
    %1446 = vmatpush.msra.mxu0 %v1417
    %1447 = vmatpush.msra.mxu0 %v1416
    %1448 = vmatmul.f32.gmra.mxu0 %v1411
    %v1449 = vpop.f32.mrf.mxu0
    %v1450 = vadd.f32 0.0, %v1449
    %1451 = vmatmul.f32.gmra.mxu0 %v1412
    %v1452 = vpop.f32.mrf.mxu0
    %v1453 = vadd.f32 0.0, %v1452
    %1454 = vmatmul.f32.gmra.mxu0 %v1413
    %v1455 = vpop.f32.mrf.mxu0
    %v1456 = vadd.f32 0.0, %v1455
    %1457 = vmatmul.f32.gmra.mxu0 %v1414
    %v1458 = vpop.f32.mrf.mxu0
    %v1459 = vadd.f32 0.0, %v1458
    %1460 = vdwg.mxu0
    %v1461 = vadd.f32 %v1405, %v1450
    %v1462 = vadd.f32 %v1406, %v1453
    %v1463 = vadd.f32 %v1407, %v1456
    %v1464 = vadd.f32 %v1408, %v1459
    %v1466 = vsel %vm239, %v1110, 0.0
    %v1467 = vsel %vm913, %v1107, 0.0
    %v1468 = vsel %vm914, %v1109, 0.0
    %v1469 = vsel %vm915, %v1111, 0.0
    %v1470 = vsel %vm916, %v1466, 0.0
    %s1471 = scalar_lea.vmem %s5, 1024
    %v1472 = vld [vmem:[%s1471] sm:$0xff]
    %v1473 = vld [vmem:[%s1471 + $0x8] sm:$0xff]
    %v1474 = vld [vmem:[%s1471 + $0x10] sm:$0xff]
    %v1475 = vld [vmem:[%s1471 + $0x18] sm:$0xff]
    %v1476 = vld [vmem:[%s1471 + $0x20] sm:$0xff]
    %v1477 = vld [vmem:[%s1471 + $0x28] sm:$0xff]
    %v1478 = vld [vmem:[%s1471 + $0x30] sm:$0xff]
    %v1479 = vld [vmem:[%s1471 + $0x38] sm:$0xff]
    %v1480 = vld [vmem:[%s1471 + $0x40] sm:$0xff]
    %v1481 = vld [vmem:[%s1471 + $0x48] sm:$0xff]
    %v1482 = vld [vmem:[%s1471 + $0x50] sm:$0xff]
    %v1483 = vld [vmem:[%s1471 + $0x58] sm:$0xff]
    %v1484 = vld [vmem:[%s1471 + $0x60] sm:$0xff]
    %v1485 = vld [vmem:[%s1471 + $0x68] sm:$0xff]
    %v1486 = vld [vmem:[%s1471 + $0x70] sm:$0xff]
    %v1487 = vld [vmem:[%s1471 + $0x78] sm:$0xff]
    %1488 = vmatpush.msra.mxu0 %v1487
    %1489 = vmatpush.msra.mxu0 %v1486
    %1490 = vmatpush.msra.mxu0 %v1485
    %1491 = vmatpush.msra.mxu0 %v1484
    %1492 = vmatpush.msra.mxu0 %v1483
    %1493 = vmatpush.msra.mxu0 %v1482
    %1494 = vmatpush.msra.mxu0 %v1481
    %1495 = vmatpush.msra.mxu0 %v1480
    %1496 = vmatpush.msra.mxu0 %v1479
    %1497 = vmatpush.msra.mxu0 %v1478
    %1498 = vmatpush.msra.mxu0 %v1477
    %1499 = vmatpush.msra.mxu0 %v1476
    %1500 = vmatpush.msra.mxu0 %v1475
    %1501 = vmatpush.msra.mxu0 %v1474
    %1502 = vmatpush.msra.mxu0 %v1473
    %1503 = vmatpush.msra.mxu0 %v1472
    %1504 = vmatmul.f32.gmra.mxu0 %v1467
    %v1505 = vpop.f32.mrf.mxu0
    %v1506 = vadd.f32 0.0, %v1505
    %1507 = vmatmul.f32.gmra.mxu0 %v1468
    %v1508 = vpop.f32.mrf.mxu0
    %v1509 = vadd.f32 0.0, %v1508
    %1510 = vmatmul.f32.gmra.mxu0 %v1469
    %v1511 = vpop.f32.mrf.mxu0
    %v1512 = vadd.f32 0.0, %v1511
    %1513 = vmatmul.f32.gmra.mxu0 %v1470
    %v1514 = vpop.f32.mrf.mxu0
    %v1515 = vadd.f32 0.0, %v1514
    %1516 = vdwg.mxu0
    %v1517 = vadd.f32 %v1461, %v1506
    %v1518 = vadd.f32 %v1462, %v1509
    %v1519 = vadd.f32 %v1463, %v1512
    %v1520 = vadd.f32 %v1464, %v1515
    %v1521 = vadd.f32 %v1517, %v372
    %v1522 = vadd.f32 %v1518, %v373
    %v1523 = vadd.f32 %v1519, %v374
    %v1524 = vadd.f32 %v1520, %v375
    %1525 = vst [vmem:[#allocation2] sm:$0xff] %v1521
    %1526 = vst [vmem:[#allocation2 + $0x8] sm:$0xff] %v1522
    %1527 = vst [vmem:[#allocation2 + $0x10] sm:$0xff] %v1523
    %1528 = vst [vmem:[#allocation2 + $0x18] sm:$0xff] %v1524
    // Predicated region
    $region26: #{test_model0_forward.1} parent=1 // pred_check
      _
    $region27: #{test_model0_forward.1} parent=1 // pred_check_branch
      %1530 = sbr.rel (0) target = $region29
    $region28: #{test_model0_forward.1} parent=1 // pred_region
      %1532 = vsyncadd [#allocation3], 0
      %s1533 = sshll.u32 [#allocation2], 4
      %s1534 = int_to_ptr.vmem [resolvable:$true] %s1533
      %s1535 = sshll.u32 %s6, 4
      %s1536 = int_to_ptr.hbm [resolvable:$true] %s1535
      %1541 = dma.vmem_to_hbm [thread:$0]  %s1534, 512, %s1536, [#allocation3], 128, 128, 8
    $region29: #{test_model0_forward.1} parent=1 // pred_fallthru
      _
    // Predicated region
    $region30: #{test_model0_forward.1} parent=1 // pred_check
      _
    $region31: #{test_model0_forward.1} parent=1 // pred_check_branch
      %1543 = sbr.rel (0) target = $region33
    $region32: #{test_model0_forward.1} parent=1 // pred_region
      %1545 = dma.done [#allocation3], 512
    $region33: #{test_model0_forward.1} parent=1 // pred_fallthru
      _
    %1546 = vsyncpa [#allocation3], 1

</llo_original>
